<compile_context>
chip_gen: v7x
topology: tpu7x:2x2x1
jax: 0.10.0
libtpu: 0.0.40
codegen_flags: <defaults>
</compile_context>

<pallas_src>
import jax
import jax.numpy as jnp
from jax.experimental import pallas as pl
from jax.experimental.pallas import tpu as pltpu


def _round_up(x, m):
    return (x + m - 1) // m * m


def _make_resident_kernel(num_steps, out_cols):
    """All (num_steps, HW, HW) weights resident in VMEM; layer loop unrolled in-kernel."""

    def kernel(x_ref, w_ref, s_ref, o_ref):
        # x_ref: (TB, HW) bf16, w_ref: (L+1, HW, HW) bf16, s_ref: (L+1, 1, HW) f32,
        # o_ref: (TB, Op) f32.
        h = x_ref[...]                                     # bf16 carry
        for l in range(num_steps):                         # static unroll (L is small)
            y = jnp.dot(h, w_ref[l],
                        preferred_element_type=jnp.float32) + s_ref[l]
            if l < num_steps - 1:
                # ReLU; Dropout is identity in eval mode. Carry stays bf16.
                h = jnp.maximum(y, 0.0).astype(h.dtype)
            else:
                # Final Linear step: no ReLU, store only the real output columns.
                o_ref[...] = y[:, :out_cols].astype(o_ref.dtype)

    return kernel


def _make_streamed_kernel(out_cols):
    """Fallback: one (HW, HW) weight tile streamed per (batch-tile, layer) grid step."""

    def kernel(x_ref, w_ref, s_ref, o_ref, h_ref):
        # x_ref: (TB, HW) bf16, w_ref: (HW, HW) bf16 (layer l), s_ref: (L+1, 1, HW) f32
        # resident, o_ref: (TB, Op) f32, h_ref: (TB, HW) bf16 activation carry.
        l = pl.program_id(1)

        @pl.when(l == 0)
        def _init():
            h_ref[...] = x_ref[...]

        y = jnp.dot(h_ref[...], w_ref[...],
                    preferred_element_type=jnp.float32) + s_ref[l]
        h_ref[...] = jnp.maximum(y, 0.0).astype(h_ref.dtype)   # harmless on last step

        @pl.when(l == pl.num_programs(1) - 1)
        def _finalize():
            o_ref[...] = y[:, :out_cols].astype(o_ref.dtype)   # final Linear: no ReLU

    return kernel


def dynamic_mlp_forward(x, w_all, shift_all, output_size, *, force_streamed=False):
    """x: (B, F_in) f32. w_all: (L+1, HW, HW) bf16 (final Linear stacked as layer L).
    shift_all: (L+1, 1, HW) f32. Returns (B, output_size) f32."""
    B, F_in = x.shape
    Lp1, HW, _ = w_all.shape
    Op = _round_up(output_size, 128)
    assert Op <= HW

    # Batch padding / tiling. Prefer >=2 tiles so the "parallel" batch axis can be
    # sharded across v7x's two TensorCores (no effect on v5e/v6e).
    Bp8 = _round_up(max(B, 8), 8)
    if Bp8 >= 512:
        TB = 256
    elif Bp8 >= 16:
        TB = _round_up((Bp8 + 1) // 2, 8)
    else:
        TB = Bp8
    Bp = _round_up(Bp8, TB)

    # bf16 input tile: the first matmul consumes it in bf16 anyway.
    x_pad = (jnp.zeros((Bp, HW), jnp.bfloat16)
             .at[:B, :F_in].set(x.astype(jnp.bfloat16)))

    try:
        vmem_cap = int(pltpu.get_tpu_info().vmem_capacity_bytes)
    except Exception:  # pragma: no cover - conservative fallback (v7x per-TC VMEM)
        vmem_cap = 64 * 1024 * 1024
    vmem_budget = int(0.75 * vmem_cap)        # ~25% headroom for compiler scratch

    w_bytes = int(w_all.size) * 2
    s_bytes = int(shift_all.size) * 4
    act_bytes = 2 * (TB * HW * 2) + 2 * (TB * Op * 4)       # double-buffered x / out tiles
    resident_need = 2 * w_bytes + 2 * s_bytes + act_bytes   # budget 2x even for const blocks

    flops = 2 * Bp * HW * HW * Lp1
    bytes_accessed = Bp * HW * 2 + w_bytes + s_bytes + Bp * Op * 4
    cost = pl.CostEstimate(flops=flops, transcendentals=0, bytes_accessed=bytes_accessed)

    use_resident = (not force_streamed) and resident_need <= int(0.375 * vmem_cap)

    if use_resident:
        vmem_limit = min(vmem_budget, max(32 * 1024 * 1024, 2 * resident_need))
        out_pad = pl.pallas_call(
            _make_resident_kernel(Lp1, Op),
            out_shape=jax.ShapeDtypeStruct((Bp, Op), jnp.float32),
            grid=(Bp // TB,),
            in_specs=[
                pl.BlockSpec((TB, HW), lambda b: (b, 0)),           # x: per batch tile
                pl.BlockSpec((Lp1, HW, HW), lambda b: (0, 0, 0)),   # weights: fully resident
                pl.BlockSpec((Lp1, 1, HW), lambda b: (0, 0, 0)),    # shifts: fully resident
            ],
            out_specs=pl.BlockSpec((TB, Op), lambda b: (b, 0)),
            compiler_params=pltpu.CompilerParams(
                dimension_semantics=("parallel",),
                vmem_limit_bytes=vmem_limit),
            cost_estimate=cost,
        )(x_pad, w_all, shift_all)
    else:
        stream_need = (2 * (HW * HW * 2) + s_bytes + 2 * (TB * HW * 2)
                       + 2 * (TB * Op * 4) + TB * HW * 2)
        vmem_limit = min(vmem_budget, max(32 * 1024 * 1024, 2 * stream_need))
        out_pad = pl.pallas_call(
            _make_streamed_kernel(Op),
            out_shape=jax.ShapeDtypeStruct((Bp, Op), jnp.float32),
            grid=(Bp // TB, Lp1),
            in_specs=[
                pl.BlockSpec((TB, HW), lambda b, l: (b, 0)),            # x: resident per tile
                pl.BlockSpec((None, HW, HW), lambda b, l: (l, 0, 0)),   # weights: streamed/layer
                pl.BlockSpec((Lp1, 1, HW), lambda b, l: (0, 0, 0)),     # shifts: resident
            ],
            out_specs=pl.BlockSpec((TB, Op), lambda b, l: (b, 0)),
            scratch_shapes=[pltpu.VMEM((TB, HW), jnp.bfloat16)],        # bf16 activation carry
            compiler_params=pltpu.CompilerParams(
                dimension_semantics=("parallel", "arbitrary"),
                vmem_limit_bytes=vmem_limit),
            cost_estimate=cost,
        )(x_pad, w_all, shift_all)

    return out_pad[:B, :output_size]


def make_params(key, input_size, output_size, hidden_layers, hidden_nodes):
    """Deterministic init + eval-mode BatchNorm1d folding.

    The final Linear is stacked as "layer L" of a single (L+1, HW, HW) weight stack,
    so both kernel paths treat it as one more matmul step (with ReLU skipped).
    Returns (padded kernel params, unpadded f32 reference params).
    """
    eps = 1e-5
    Hp = _round_up(max(input_size, hidden_nodes), 128)
    Op = _round_up(output_size, 128)
    HW = max(Hp, Op)   # unified padded feature width (zero pad rows/cols/shift = no-op)

    keys = jax.random.split(key, hidden_layers * 6 + 2)
    ws_pad, shifts_pad = [], []
    ws_ref, shifts_ref = [], []
    fan_in = input_size
    kidx = 0
    for _ in range(hidden_layers):
        bound = 1.0 / (fan_in ** 0.5)
        W = jax.random.uniform(keys[kidx], (hidden_nodes, fan_in),
                               minval=-bound, maxval=bound, dtype=jnp.float32); kidx += 1
        b = jax.random.uniform(keys[kidx], (hidden_nodes,),
                               minval=-bound, maxval=bound, dtype=jnp.float32); kidx += 1
        gamma = 1.0 + 0.1 * jax.random.normal(keys[kidx], (hidden_nodes,), jnp.float32); kidx += 1
        beta = 0.1 * jax.random.normal(keys[kidx], (hidden_nodes,), jnp.float32); kidx += 1
        rmean = 0.1 * jax.random.normal(keys[kidx], (hidden_nodes,), jnp.float32); kidx += 1
        rvar = 1.0 + 0.1 * jax.random.uniform(keys[kidx], (hidden_nodes,),
                                              dtype=jnp.float32); kidx += 1

        scale = gamma / jnp.sqrt(rvar + eps)          # (H,)  eval-mode BN folding
        w_eff = W.T * scale[None, :]                  # (fan_in, H)
        shift = (b - rmean) * scale + beta            # (H,)

        ws_ref.append(w_eff)
        shifts_ref.append(shift[None, :])
        ws_pad.append(jnp.zeros((HW, HW), jnp.float32)
                      .at[:fan_in, :hidden_nodes].set(w_eff))
        shifts_pad.append(jnp.zeros((1, HW), jnp.float32)
                          .at[:, :hidden_nodes].set(shift[None, :]))
        fan_in = hidden_nodes

    bound = 1.0 / (hidden_nodes ** 0.5)
    W_out = jax.random.uniform(keys[kidx], (output_size, hidden_nodes),
                               minval=-bound, maxval=bound, dtype=jnp.float32); kidx += 1
    b_out = jax.random.uniform(keys[kidx], (output_size,),
                               minval=-bound, maxval=bound, dtype=jnp.float32)

    # Final Linear as "layer L" (no BN; the kernels skip ReLU on this step).
    ws_pad.append(jnp.zeros((HW, HW), jnp.float32)
                  .at[:hidden_nodes, :output_size].set(W_out.T))
    shifts_pad.append(jnp.zeros((1, HW), jnp.float32)
                      .at[:, :output_size].set(b_out[None, :]))

    params = dict(
        w_all=jnp.stack(ws_pad).astype(jnp.bfloat16),   # (L+1, HW, HW) bf16
        shift_all=jnp.stack(shifts_pad),                # (L+1, 1, HW) f32
    )
    ref_params = (ws_ref, shifts_ref, W_out.T, b_out[None, :])
    return params, ref_params


def reference_forward(x, ws, shifts, w_out, b_out):
    """Pure-f32, unpadded reference of the eval-mode module forward."""
    h = x.astype(jnp.float32)
    for w, s in zip(ws, shifts):
        h = jnp.maximum(jnp.dot(h, w, precision="highest") + s, 0.0)
    return jnp.dot(h, w_out, precision="highest") + b_out


if __name__ == "__main__":
    # Shapes consistent with the module defaults: input_size=20,
    # hidden_nodes=None -> input_size, hidden_layers=16, small batch.
    batch = 8
    input_size = 20
    hidden_nodes = input_size
    output_size = 4
    hidden_layers = 16

    key = jax.random.PRNGKey(0)
    kx, kp = jax.random.split(key)
    x = jax.random.normal(kx, (batch, input_size), dtype=jnp.float32)

    params, ref_params = make_params(kp, input_size, output_size,
                                     hidden_layers, hidden_nodes)
    ref = reference_forward(x, *ref_params)

    # Fast path: whole weight stack resident in VMEM, layer loop unrolled in-kernel.
    out = dynamic_mlp_forward(x, params["w_all"], params["shift_all"], output_size)
    out = jax.block_until_ready(out)
    assert out.shape == (batch, output_size)
    # bf16 weights + bf16 activation carry over 17 layers vs f32 reference.
    assert jnp.allclose(out, ref, atol=5e-2, rtol=5e-2), \
        f"resident path max abs err = {float(jnp.max(jnp.abs(out - ref)))}"

    # Large-model fallback (streamed layer axis), forced here for a correctness check.
    out_s = dynamic_mlp_forward(x, params["w_all"], params["shift_all"], output_size,
                                force_streamed=True)
    out_s = jax.block_until_ready(out_s)
    assert out_s.shape == (batch, output_size)
    assert jnp.allclose(out_s, ref, atol=5e-2, rtol=5e-2), \
        f"streamed path max abs err = {float(jnp.max(jnp.abs(out_s - ref)))}"

    print("KERNEL_OK")
</pallas_src>

<mosaic_0001>
module attributes {stable_mosaic.version = 11 : i64} {
  func.func @kernel(%arg0: i32, %arg1: memref<8x128xbf16, #tpu.memory_space<vmem>>, %arg2: memref<17x128x128xbf16, #tpu.memory_space<vmem>>, %arg3: memref<17x1x128xf32, #tpu.memory_space<vmem>>, %arg4: memref<8x128xf32, #tpu.memory_space<vmem>>) attributes {dimension_semantics = [#tpu.dimension_semantics<parallel>], iteration_bounds = array<i64: 1>, scalar_prefetch = 0 : i64, scratch_operands = 0 : i64, tpu.core_type = #tpu.core_type<tc>, window_params = [{transform_indices = @transform_0, window_bounds = array<i64: 8, 128>}, {pipeline_mode = #tpu.pipeline_mode<synchronous>, transform_indices = @transform_1, window_bounds = array<i64: 17, 128, 128>}, {pipeline_mode = #tpu.pipeline_mode<synchronous>, transform_indices = @transform_2, window_bounds = array<i64: 17, 1, 128>}, {transform_indices = @transform_3, window_bounds = array<i64: 8, 128>}]} {
    %c0 = arith.constant 0 : index
    %c0_0 = arith.constant 0 : index
    %0 = vector.load %arg1[%c0, %c0_0] : memref<8x128xbf16, #tpu.memory_space<vmem>>, vector<8x128xbf16>
    %c0_1 = arith.constant 0 : index
    %c0_2 = arith.constant 0 : index
    %c0_3 = arith.constant 0 : index
    %1 = vector.load %arg2[%c0_1, %c0_2, %c0_3] : memref<17x128x128xbf16, #tpu.memory_space<vmem>>, vector<1x128x128xbf16>
    %2 = vector.shape_cast %1 : vector<1x128x128xbf16> to vector<128x128xbf16>
    %cst = arith.constant dense<0.000000e+00> : vector<8x128xf32>
    %3 = tpu.matmul %0, %2, %cst {dimension_numbers = #tpu.dot_dimension_numbers<[1], [0], [0], [1], [0, 0, 1, 1], [], []>} : vector<8x128xbf16>, vector<128x128xbf16>, vector<8x128xf32> -> vector<8x128xf32>
    %c0_4 = arith.constant 0 : index
    %c0_5 = arith.constant 0 : index
    %c0_6 = arith.constant 0 : index
    %4 = vector.load %arg3[%c0_4, %c0_5, %c0_6] : memref<17x1x128xf32, #tpu.memory_space<vmem>>, vector<1x1x128xf32>
    %5 = vector.shape_cast %4 : vector<1x1x128xf32> to vector<1x128xf32>
    %6 = vector.broadcast %5 : vector<1x128xf32> to vector<8x128xf32>
    %7 = arith.addf %3, %6 : vector<8x128xf32>
    %cst_7 = arith.constant 0.000000e+00 : f32
    %8 = vector.broadcast %cst_7 : f32 to vector<8x128xf32>
    %9 = arith.maximumf %7, %8 : vector<8x128xf32>
    %10 = arith.truncf %9 : vector<8x128xf32> to vector<8x128xbf16>
    %c1 = arith.constant 1 : index
    %c0_8 = arith.constant 0 : index
    %c0_9 = arith.constant 0 : index
    %11 = vector.load %arg2[%c1, %c0_8, %c0_9] : memref<17x128x128xbf16, #tpu.memory_space<vmem>>, vector<1x128x128xbf16>
    %12 = vector.shape_cast %11 : vector<1x128x128xbf16> to vector<128x128xbf16>
    %cst_10 = arith.constant dense<0.000000e+00> : vector<8x128xf32>
    %13 = tpu.matmul %10, %12, %cst_10 {dimension_numbers = #tpu.dot_dimension_numbers<[1], [0], [0], [1], [0, 0, 1, 1], [], []>} : vector<8x128xbf16>, vector<128x128xbf16>, vector<8x128xf32> -> vector<8x128xf32>
    %c1_11 = arith.constant 1 : index
    %c0_12 = arith.constant 0 : index
    %c0_13 = arith.constant 0 : index
    %14 = vector.load %arg3[%c1_11, %c0_12, %c0_13] : memref<17x1x128xf32, #tpu.memory_space<vmem>>, vector<1x1x128xf32>
    %15 = vector.shape_cast %14 : vector<1x1x128xf32> to vector<1x128xf32>
    %16 = vector.broadcast %15 : vector<1x128xf32> to vector<8x128xf32>
    %17 = arith.addf %13, %16 : vector<8x128xf32>
    %cst_14 = arith.constant 0.000000e+00 : f32
    %18 = vector.broadcast %cst_14 : f32 to vector<8x128xf32>
    %19 = arith.maximumf %17, %18 : vector<8x128xf32>
    %20 = arith.truncf %19 : vector<8x128xf32> to vector<8x128xbf16>
    %c2 = arith.constant 2 : index
    %c0_15 = arith.constant 0 : index
    %c0_16 = arith.constant 0 : index
    %21 = vector.load %arg2[%c2, %c0_15, %c0_16] : memref<17x128x128xbf16, #tpu.memory_space<vmem>>, vector<1x128x128xbf16>
    %22 = vector.shape_cast %21 : vector<1x128x128xbf16> to vector<128x128xbf16>
    %cst_17 = arith.constant dense<0.000000e+00> : vector<8x128xf32>
    %23 = tpu.matmul %20, %22, %cst_17 {dimension_numbers = #tpu.dot_dimension_numbers<[1], [0], [0], [1], [0, 0, 1, 1], [], []>} : vector<8x128xbf16>, vector<128x128xbf16>, vector<8x128xf32> -> vector<8x128xf32>
    %c2_18 = arith.constant 2 : index
    %c0_19 = arith.constant 0 : index
    %c0_20 = arith.constant 0 : index
    %24 = vector.load %arg3[%c2_18, %c0_19, %c0_20] : memref<17x1x128xf32, #tpu.memory_space<vmem>>, vector<1x1x128xf32>
    %25 = vector.shape_cast %24 : vector<1x1x128xf32> to vector<1x128xf32>
    %26 = vector.broadcast %25 : vector<1x128xf32> to vector<8x128xf32>
    %27 = arith.addf %23, %26 : vector<8x128xf32>
    %cst_21 = arith.constant 0.000000e+00 : f32
    %28 = vector.broadcast %cst_21 : f32 to vector<8x128xf32>
    %29 = arith.maximumf %27, %28 : vector<8x128xf32>
    %30 = arith.truncf %29 : vector<8x128xf32> to vector<8x128xbf16>
    %c3 = arith.constant 3 : index
    %c0_22 = arith.constant 0 : index
    %c0_23 = arith.constant 0 : index
    %31 = vector.load %arg2[%c3, %c0_22, %c0_23] : memref<17x128x128xbf16, #tpu.memory_space<vmem>>, vector<1x128x128xbf16>
    %32 = vector.shape_cast %31 : vector<1x128x128xbf16> to vector<128x128xbf16>
    %cst_24 = arith.constant dense<0.000000e+00> : vector<8x128xf32>
    %33 = tpu.matmul %30, %32, %cst_24 {dimension_numbers = #tpu.dot_dimension_numbers<[1], [0], [0], [1], [0, 0, 1, 1], [], []>} : vector<8x128xbf16>, vector<128x128xbf16>, vector<8x128xf32> -> vector<8x128xf32>
    %c3_25 = arith.constant 3 : index
    %c0_26 = arith.constant 0 : index
    %c0_27 = arith.constant 0 : index
    %34 = vector.load %arg3[%c3_25, %c0_26, %c0_27] : memref<17x1x128xf32, #tpu.memory_space<vmem>>, vector<1x1x128xf32>
    %35 = vector.shape_cast %34 : vector<1x1x128xf32> to vector<1x128xf32>
    %36 = vector.broadcast %35 : vector<1x128xf32> to vector<8x128xf32>
    %37 = arith.addf %33, %36 : vector<8x128xf32>
    %cst_28 = arith.constant 0.000000e+00 : f32
    %38 = vector.broadcast %cst_28 : f32 to vector<8x128xf32>
    %39 = arith.maximumf %37, %38 : vector<8x128xf32>
    %40 = arith.truncf %39 : vector<8x128xf32> to vector<8x128xbf16>
    %c4 = arith.constant 4 : index
    %c0_29 = arith.constant 0 : index
    %c0_30 = arith.constant 0 : index
    %41 = vector.load %arg2[%c4, %c0_29, %c0_30] : memref<17x128x128xbf16, #tpu.memory_space<vmem>>, vector<1x128x128xbf16>
    %42 = vector.shape_cast %41 : vector<1x128x128xbf16> to vector<128x128xbf16>
    %cst_31 = arith.constant dense<0.000000e+00> : vector<8x128xf32>
    %43 = tpu.matmul %40, %42, %cst_31 {dimension_numbers = #tpu.dot_dimension_numbers<[1], [0], [0], [1], [0, 0, 1, 1], [], []>} : vector<8x128xbf16>, vector<128x128xbf16>, vector<8x128xf32> -> vector<8x128xf32>
    %c4_32 = arith.constant 4 : index
    %c0_33 = arith.constant 0 : index
    %c0_34 = arith.constant 0 : index
    %44 = vector.load %arg3[%c4_32, %c0_33, %c0_34] : memref<17x1x128xf32, #tpu.memory_space<vmem>>, vector<1x1x128xf32>
    %45 = vector.shape_cast %44 : vector<1x1x128xf32> to vector<1x128xf32>
    %46 = vector.broadcast %45 : vector<1x128xf32> to vector<8x128xf32>
    %47 = arith.addf %43, %46 : vector<8x128xf32>
    %cst_35 = arith.constant 0.000000e+00 : f32
    %48 = vector.broadcast %cst_35 : f32 to vector<8x128xf32>
    %49 = arith.maximumf %47, %48 : vector<8x128xf32>
    %50 = arith.truncf %49 : vector<8x128xf32> to vector<8x128xbf16>
    %c5 = arith.constant 5 : index
    %c0_36 = arith.constant 0 : index
    %c0_37 = arith.constant 0 : index
    %51 = vector.load %arg2[%c5, %c0_36, %c0_37] : memref<17x128x128xbf16, #tpu.memory_space<vmem>>, vector<1x128x128xbf16>
    %52 = vector.shape_cast %51 : vector<1x128x128xbf16> to vector<128x128xbf16>
    %cst_38 = arith.constant dense<0.000000e+00> : vector<8x128xf32>
    %53 = tpu.matmul %50, %52, %cst_38 {dimension_numbers = #tpu.dot_dimension_numbers<[1], [0], [0], [1], [0, 0, 1, 1], [], []>} : vector<8x128xbf16>, vector<128x128xbf16>, vector<8x128xf32> -> vector<8x128xf32>
    %c5_39 = arith.constant 5 : index
    %c0_40 = arith.constant 0 : index
    %c0_41 = arith.constant 0 : index
    %54 = vector.load %arg3[%c5_39, %c0_40, %c0_41] : memref<17x1x128xf32, #tpu.memory_space<vmem>>, vector<1x1x128xf32>
    %55 = vector.shape_cast %54 : vector<1x1x128xf32> to vector<1x128xf32>
    %56 = vector.broadcast %55 : vector<1x128xf32> to vector<8x128xf32>
    %57 = arith.addf %53, %56 : vector<8x128xf32>
    %cst_42 = arith.constant 0.000000e+00 : f32
    %58 = vector.broadcast %cst_42 : f32 to vector<8x128xf32>
    %59 = arith.maximumf %57, %58 : vector<8x128xf32>
    %60 = arith.truncf %59 : vector<8x128xf32> to vector<8x128xbf16>
    %c6 = arith.constant 6 : index
    %c0_43 = arith.constant 0 : index
    %c0_44 = arith.constant 0 : index
    %61 = vector.load %arg2[%c6, %c0_43, %c0_44] : memref<17x128x128xbf16, #tpu.memory_space<vmem>>, vector<1x128x128xbf16>
    %62 = vector.shape_cast %61 : vector<1x128x128xbf16> to vector<128x128xbf16>
    %cst_45 = arith.constant dense<0.000000e+00> : vector<8x128xf32>
    %63 = tpu.matmul %60, %62, %cst_45 {dimension_numbers = #tpu.dot_dimension_numbers<[1], [0], [0], [1], [0, 0, 1, 1], [], []>} : vector<8x128xbf16>, vector<128x128xbf16>, vector<8x128xf32> -> vector<8x128xf32>
    %c6_46 = arith.constant 6 : index
    %c0_47 = arith.constant 0 : index
    %c0_48 = arith.constant 0 : index
    %64 = vector.load %arg3[%c6_46, %c0_47, %c0_48] : memref<17x1x128xf32, #tpu.memory_space<vmem>>, vector<1x1x128xf32>
    %65 = vector.shape_cast %64 : vector<1x1x128xf32> to vector<1x128xf32>
    %66 = vector.broadcast %65 : vector<1x128xf32> to vector<8x128xf32>
    %67 = arith.addf %63, %66 : vector<8x128xf32>
    %cst_49 = arith.constant 0.000000e+00 : f32
    %68 = vector.broadcast %cst_49 : f32 to vector<8x128xf32>
    %69 = arith.maximumf %67, %68 : vector<8x128xf32>
    %70 = arith.truncf %69 : vector<8x128xf32> to vector<8x128xbf16>
    %c7 = arith.constant 7 : index
    %c0_50 = arith.constant 0 : index
    %c0_51 = arith.constant 0 : index
    %71 = vector.load %arg2[%c7, %c0_50, %c0_51] : memref<17x128x128xbf16, #tpu.memory_space<vmem>>, vector<1x128x128xbf16>
    %72 = vector.shape_cast %71 : vector<1x128x128xbf16> to vector<128x128xbf16>
    %cst_52 = arith.constant dense<0.000000e+00> : vector<8x128xf32>
    %73 = tpu.matmul %70, %72, %cst_52 {dimension_numbers = #tpu.dot_dimension_numbers<[1], [0], [0], [1], [0, 0, 1, 1], [], []>} : vector<8x128xbf16>, vector<128x128xbf16>, vector<8x128xf32> -> vector<8x128xf32>
    %c7_53 = arith.constant 7 : index
    %c0_54 = arith.constant 0 : index
    %c0_55 = arith.constant 0 : index
    %74 = vector.load %arg3[%c7_53, %c0_54, %c0_55] : memref<17x1x128xf32, #tpu.memory_space<vmem>>, vector<1x1x128xf32>
    %75 = vector.shape_cast %74 : vector<1x1x128xf32> to vector<1x128xf32>
    %76 = vector.broadcast %75 : vector<1x128xf32> to vector<8x128xf32>
    %77 = arith.addf %73, %76 : vector<8x128xf32>
    %cst_56 = arith.constant 0.000000e+00 : f32
    %78 = vector.broadcast %cst_56 : f32 to vector<8x128xf32>
    %79 = arith.maximumf %77, %78 : vector<8x128xf32>
    %80 = arith.truncf %79 : vector<8x128xf32> to vector<8x128xbf16>
    %c8 = arith.constant 8 : index
    %c0_57 = arith.constant 0 : index
    %c0_58 = arith.constant 0 : index
    %81 = vector.load %arg2[%c8, %c0_57, %c0_58] : memref<17x128x128xbf16, #tpu.memory_space<vmem>>, vector<1x128x128xbf16>
    %82 = vector.shape_cast %81 : vector<1x128x128xbf16> to vector<128x128xbf16>
    %cst_59 = arith.constant dense<0.000000e+00> : vector<8x128xf32>
    %83 = tpu.matmul %80, %82, %cst_59 {dimension_numbers = #tpu.dot_dimension_numbers<[1], [0], [0], [1], [0, 0, 1, 1], [], []>} : vector<8x128xbf16>, vector<128x128xbf16>, vector<8x128xf32> -> vector<8x128xf32>
    %c8_60 = arith.constant 8 : index
    %c0_61 = arith.constant 0 : index
    %c0_62 = arith.constant 0 : index
    %84 = vector.load %arg3[%c8_60, %c0_61, %c0_62] : memref<17x1x128xf32, #tpu.memory_space<vmem>>, vector<1x1x128xf32>
    %85 = vector.shape_cast %84 : vector<1x1x128xf32> to vector<1x128xf32>
    %86 = vector.broadcast %85 : vector<1x128xf32> to vector<8x128xf32>
    %87 = arith.addf %83, %86 : vector<8x128xf32>
    %cst_63 = arith.constant 0.000000e+00 : f32
    %88 = vector.broadcast %cst_63 : f32 to vector<8x128xf32>
    %89 = arith.maximumf %87, %88 : vector<8x128xf32>
    %90 = arith.truncf %89 : vector<8x128xf32> to vector<8x128xbf16>
    %c9 = arith.constant 9 : index
    %c0_64 = arith.constant 0 : index
    %c0_65 = arith.constant 0 : index
    %91 = vector.load %arg2[%c9, %c0_64, %c0_65] : memref<17x128x128xbf16, #tpu.memory_space<vmem>>, vector<1x128x128xbf16>
    %92 = vector.shape_cast %91 : vector<1x128x128xbf16> to vector<128x128xbf16>
    %cst_66 = arith.constant dense<0.000000e+00> : vector<8x128xf32>
    %93 = tpu.matmul %90, %92, %cst_66 {dimension_numbers = #tpu.dot_dimension_numbers<[1], [0], [0], [1], [0, 0, 1, 1], [], []>} : vector<8x128xbf16>, vector<128x128xbf16>, vector<8x128xf32> -> vector<8x128xf32>
    %c9_67 = arith.constant 9 : index
    %c0_68 = arith.constant 0 : index
    %c0_69 = arith.constant 0 : index
    %94 = vector.load %arg3[%c9_67, %c0_68, %c0_69] : memref<17x1x128xf32, #tpu.memory_space<vmem>>, vector<1x1x128xf32>
    %95 = vector.shape_cast %94 : vector<1x1x128xf32> to vector<1x128xf32>
    %96 = vector.broadcast %95 : vector<1x128xf32> to vector<8x128xf32>
    %97 = arith.addf %93, %96 : vector<8x128xf32>
    %cst_70 = arith.constant 0.000000e+00 : f32
    %98 = vector.broadcast %cst_70 : f32 to vector<8x128xf32>
    %99 = arith.maximumf %97, %98 : vector<8x128xf32>
    %100 = arith.truncf %99 : vector<8x128xf32> to vector<8x128xbf16>
    %c10 = arith.constant 10 : index
    %c0_71 = arith.constant 0 : index
    %c0_72 = arith.constant 0 : index
    %101 = vector.load %arg2[%c10, %c0_71, %c0_72] : memref<17x128x128xbf16, #tpu.memory_space<vmem>>, vector<1x128x128xbf16>
    %102 = vector.shape_cast %101 : vector<1x128x128xbf16> to vector<128x128xbf16>
    %cst_73 = arith.constant dense<0.000000e+00> : vector<8x128xf32>
    %103 = tpu.matmul %100, %102, %cst_73 {dimension_numbers = #tpu.dot_dimension_numbers<[1], [0], [0], [1], [0, 0, 1, 1], [], []>} : vector<8x128xbf16>, vector<128x128xbf16>, vector<8x128xf32> -> vector<8x128xf32>
    %c10_74 = arith.constant 10 : index
    %c0_75 = arith.constant 0 : index
    %c0_76 = arith.constant 0 : index
    %104 = vector.load %arg3[%c10_74, %c0_75, %c0_76] : memref<17x1x128xf32, #tpu.memory_space<vmem>>, vector<1x1x128xf32>
    %105 = vector.shape_cast %104 : vector<1x1x128xf32> to vector<1x128xf32>
    %106 = vector.broadcast %105 : vector<1x128xf32> to vector<8x128xf32>
    %107 = arith.addf %103, %106 : vector<8x128xf32>
    %cst_77 = arith.constant 0.000000e+00 : f32
    %108 = vector.broadcast %cst_77 : f32 to vector<8x128xf32>
    %109 = arith.maximumf %107, %108 : vector<8x128xf32>
    %110 = arith.truncf %109 : vector<8x128xf32> to vector<8x128xbf16>
    %c11 = arith.constant 11 : index
    %c0_78 = arith.constant 0 : index
    %c0_79 = arith.constant 0 : index
    %111 = vector.load %arg2[%c11, %c0_78, %c0_79] : memref<17x128x128xbf16, #tpu.memory_space<vmem>>, vector<1x128x128xbf16>
    %112 = vector.shape_cast %111 : vector<1x128x128xbf16> to vector<128x128xbf16>
    %cst_80 = arith.constant dense<0.000000e+00> : vector<8x128xf32>
    %113 = tpu.matmul %110, %112, %cst_80 {dimension_numbers = #tpu.dot_dimension_numbers<[1], [0], [0], [1], [0, 0, 1, 1], [], []>} : vector<8x128xbf16>, vector<128x128xbf16>, vector<8x128xf32> -> vector<8x128xf32>
    %c11_81 = arith.constant 11 : index
    %c0_82 = arith.constant 0 : index
    %c0_83 = arith.constant 0 : index
    %114 = vector.load %arg3[%c11_81, %c0_82, %c0_83] : memref<17x1x128xf32, #tpu.memory_space<vmem>>, vector<1x1x128xf32>
    %115 = vector.shape_cast %114 : vector<1x1x128xf32> to vector<1x128xf32>
    %116 = vector.broadcast %115 : vector<1x128xf32> to vector<8x128xf32>
    %117 = arith.addf %113, %116 : vector<8x128xf32>
    %cst_84 = arith.constant 0.000000e+00 : f32
    %118 = vector.broadcast %cst_84 : f32 to vector<8x128xf32>
    %119 = arith.maximumf %117, %118 : vector<8x128xf32>
    %120 = arith.truncf %119 : vector<8x128xf32> to vector<8x128xbf16>
    %c12 = arith.constant 12 : index
    %c0_85 = arith.constant 0 : index
    %c0_86 = arith.constant 0 : index
    %121 = vector.load %arg2[%c12, %c0_85, %c0_86] : memref<17x128x128xbf16, #tpu.memory_space<vmem>>, vector<1x128x128xbf16>
    %122 = vector.shape_cast %121 : vector<1x128x128xbf16> to vector<128x128xbf16>
    %cst_87 = arith.constant dense<0.000000e+00> : vector<8x128xf32>
    %123 = tpu.matmul %120, %122, %cst_87 {dimension_numbers = #tpu.dot_dimension_numbers<[1], [0], [0], [1], [0, 0, 1, 1], [], []>} : vector<8x128xbf16>, vector<128x128xbf16>, vector<8x128xf32> -> vector<8x128xf32>
    %c12_88 = arith.constant 12 : index
    %c0_89 = arith.constant 0 : index
    %c0_90 = arith.constant 0 : index
    %124 = vector.load %arg3[%c12_88, %c0_89, %c0_90] : memref<17x1x128xf32, #tpu.memory_space<vmem>>, vector<1x1x128xf32>
    %125 = vector.shape_cast %124 : vector<1x1x128xf32> to vector<1x128xf32>
    %126 = vector.broadcast %125 : vector<1x128xf32> to vector<8x128xf32>
    %127 = arith.addf %123, %126 : vector<8x128xf32>
    %cst_91 = arith.constant 0.000000e+00 : f32
    %128 = vector.broadcast %cst_91 : f32 to vector<8x128xf32>
    %129 = arith.maximumf %127, %128 : vector<8x128xf32>
    %130 = arith.truncf %129 : vector<8x128xf32> to vector<8x128xbf16>
    %c13 = arith.constant 13 : index
    %c0_92 = arith.constant 0 : index
    %c0_93 = arith.constant 0 : index
    %131 = vector.load %arg2[%c13, %c0_92, %c0_93] : memref<17x128x128xbf16, #tpu.memory_space<vmem>>, vector<1x128x128xbf16>
    %132 = vector.shape_cast %131 : vector<1x128x128xbf16> to vector<128x128xbf16>
    %cst_94 = arith.constant dense<0.000000e+00> : vector<8x128xf32>
    %133 = tpu.matmul %130, %132, %cst_94 {dimension_numbers = #tpu.dot_dimension_numbers<[1], [0], [0], [1], [0, 0, 1, 1], [], []>} : vector<8x128xbf16>, vector<128x128xbf16>, vector<8x128xf32> -> vector<8x128xf32>
    %c13_95 = arith.constant 13 : index
    %c0_96 = arith.constant 0 : index
    %c0_97 = arith.constant 0 : index
    %134 = vector.load %arg3[%c13_95, %c0_96, %c0_97] : memref<17x1x128xf32, #tpu.memory_space<vmem>>, vector<1x1x128xf32>
    %135 = vector.shape_cast %134 : vector<1x1x128xf32> to vector<1x128xf32>
    %136 = vector.broadcast %135 : vector<1x128xf32> to vector<8x128xf32>
    %137 = arith.addf %133, %136 : vector<8x128xf32>
    %cst_98 = arith.constant 0.000000e+00 : f32
    %138 = vector.broadcast %cst_98 : f32 to vector<8x128xf32>
    %139 = arith.maximumf %137, %138 : vector<8x128xf32>
    %140 = arith.truncf %139 : vector<8x128xf32> to vector<8x128xbf16>
    %c14 = arith.constant 14 : index
    %c0_99 = arith.constant 0 : index
    %c0_100 = arith.constant 0 : index
    %141 = vector.load %arg2[%c14, %c0_99, %c0_100] : memref<17x128x128xbf16, #tpu.memory_space<vmem>>, vector<1x128x128xbf16>
    %142 = vector.shape_cast %141 : vector<1x128x128xbf16> to vector<128x128xbf16>
    %cst_101 = arith.constant dense<0.000000e+00> : vector<8x128xf32>
    %143 = tpu.matmul %140, %142, %cst_101 {dimension_numbers = #tpu.dot_dimension_numbers<[1], [0], [0], [1], [0, 0, 1, 1], [], []>} : vector<8x128xbf16>, vector<128x128xbf16>, vector<8x128xf32> -> vector<8x128xf32>
    %c14_102 = arith.constant 14 : index
    %c0_103 = arith.constant 0 : index
    %c0_104 = arith.constant 0 : index
    %144 = vector.load %arg3[%c14_102, %c0_103, %c0_104] : memref<17x1x128xf32, #tpu.memory_space<vmem>>, vector<1x1x128xf32>
    %145 = vector.shape_cast %144 : vector<1x1x128xf32> to vector<1x128xf32>
    %146 = vector.broadcast %145 : vector<1x128xf32> to vector<8x128xf32>
    %147 = arith.addf %143, %146 : vector<8x128xf32>
    %cst_105 = arith.constant 0.000000e+00 : f32
    %148 = vector.broadcast %cst_105 : f32 to vector<8x128xf32>
    %149 = arith.maximumf %147, %148 : vector<8x128xf32>
    %150 = arith.truncf %149 : vector<8x128xf32> to vector<8x128xbf16>
    %c15 = arith.constant 15 : index
    %c0_106 = arith.constant 0 : index
    %c0_107 = arith.constant 0 : index
    %151 = vector.load %arg2[%c15, %c0_106, %c0_107] : memref<17x128x128xbf16, #tpu.memory_space<vmem>>, vector<1x128x128xbf16>
    %152 = vector.shape_cast %151 : vector<1x128x128xbf16> to vector<128x128xbf16>
    %cst_108 = arith.constant dense<0.000000e+00> : vector<8x128xf32>
    %153 = tpu.matmul %150, %152, %cst_108 {dimension_numbers = #tpu.dot_dimension_numbers<[1], [0], [0], [1], [0, 0, 1, 1], [], []>} : vector<8x128xbf16>, vector<128x128xbf16>, vector<8x128xf32> -> vector<8x128xf32>
    %c15_109 = arith.constant 15 : index
    %c0_110 = arith.constant 0 : index
    %c0_111 = arith.constant 0 : index
    %154 = vector.load %arg3[%c15_109, %c0_110, %c0_111] : memref<17x1x128xf32, #tpu.memory_space<vmem>>, vector<1x1x128xf32>
    %155 = vector.shape_cast %154 : vector<1x1x128xf32> to vector<1x128xf32>
    %156 = vector.broadcast %155 : vector<1x128xf32> to vector<8x128xf32>
    %157 = arith.addf %153, %156 : vector<8x128xf32>
    %cst_112 = arith.constant 0.000000e+00 : f32
    %158 = vector.broadcast %cst_112 : f32 to vector<8x128xf32>
    %159 = arith.maximumf %157, %158 : vector<8x128xf32>
    %160 = arith.truncf %159 : vector<8x128xf32> to vector<8x128xbf16>
    %c16 = arith.constant 16 : index
    %c0_113 = arith.constant 0 : index
    %c0_114 = arith.constant 0 : index
    %161 = vector.load %arg2[%c16, %c0_113, %c0_114] : memref<17x128x128xbf16, #tpu.memory_space<vmem>>, vector<1x128x128xbf16>
    %162 = vector.shape_cast %161 : vector<1x128x128xbf16> to vector<128x128xbf16>
    %cst_115 = arith.constant dense<0.000000e+00> : vector<8x128xf32>
    %163 = tpu.matmul %160, %162, %cst_115 {dimension_numbers = #tpu.dot_dimension_numbers<[1], [0], [0], [1], [0, 0, 1, 1], [], []>} : vector<8x128xbf16>, vector<128x128xbf16>, vector<8x128xf32> -> vector<8x128xf32>
    %c16_116 = arith.constant 16 : index
    %c0_117 = arith.constant 0 : index
    %c0_118 = arith.constant 0 : index
    %164 = vector.load %arg3[%c16_116, %c0_117, %c0_118] : memref<17x1x128xf32, #tpu.memory_space<vmem>>, vector<1x1x128xf32>
    %165 = vector.shape_cast %164 : vector<1x1x128xf32> to vector<1x128xf32>
    %166 = vector.broadcast %165 : vector<1x128xf32> to vector<8x128xf32>
    %167 = arith.addf %163, %166 : vector<8x128xf32>
    %c0_119 = arith.constant 0 : index
    %c0_120 = arith.constant 0 : index
    %168 = vector.load %arg4[%c0_119, %c0_120] : memref<8x128xf32, #tpu.memory_space<vmem>>, vector<8x128xf32>
    tpu.vector_store %arg4[%c0_119, %c0_120], %167 {strides = array<i32>} : memref<8x128xf32, #tpu.memory_space<vmem>>, vector<8x128xf32>,
    return
  }
  func.func @transform_0(%arg0: i32) -> (i32, i32) {
    %c0_i32 = arith.constant 0 : i32
    %c0_i32_0 = arith.constant 0 : i32
    return %arg0, %c0_i32 : i32, i32
  }
  func.func @transform_1(%arg0: i32) -> (i32, i32, i32) {
    %c0_i32 = arith.constant 0 : i32
    %c0_i32_0 = arith.constant 0 : i32
    %c0_i32_1 = arith.constant 0 : i32
    %c0_i32_2 = arith.constant 0 : i32
    return %c0_i32, %c0_i32_0, %c0_i32_1 : i32, i32, i32
  }
  func.func @transform_2(%arg0: i32) -> (i32, i32, i32) {
    %c0_i32 = arith.constant 0 : i32
    %c0_i32_0 = arith.constant 0 : i32
    %c0_i32_1 = arith.constant 0 : i32
    %c0_i32_2 = arith.constant 0 : i32
    return %c0_i32, %c0_i32_0, %c0_i32_1 : i32, i32, i32
  }
  func.func @transform_3(%arg0: i32) -> (i32, i32) {
    %c0_i32 = arith.constant 0 : i32
    %c0_i32_0 = arith.constant 0 : i32
    return %arg0, %c0_i32 : i32, i32
  }
}

</mosaic_0001>

<llo_original>
// kernel: tpu_custom_call.1
$region0: #{tpu_custom_call.1}
  #allocation0 [shape = 'u32[]', space=smem, size = 0x4, offset = 0x4, fixed_abs, tag = 'smem constant byte address 0x4 - core index']
  #allocation1 [shape = 'u32[144,128]{1,0:T(1,128)}', space=vmem, size = 0x12000, scoped, tag = 'internal scratch']
  %s0 = inlined_call_operand.hbm [shape: bf16[8,128], index: 0, kind: input, shape index: {}]
  %s1 = inlined_call_operand.hbm [shape: bf16[17,128,128], index: 1, kind: input, shape index: {}]
  %s2 = inlined_call_operand.hbm [shape: f32[17,1,128], index: 2, kind: input, shape index: {}]
  %s3 = inlined_call_operand.hbm [shape: f32[8,128], index: 3, kind: output, shape index: {}]
  %s4 = sld [smem:[#allocation0]]
  $region34: #{tpu_custom_call.1} parent=0
    _
  %s6 = ssub.s32 1, %s4
  %s7 = scalar_select 0, %s6, %s4
  $region1: #{tpu_custom_call.1} parent=0
    #allocation2 [shape = 'u8[2048]{0}', space=vmem, size = 0x800, scoped, tag = 'input window, operand 0, single buffered']
    #allocation3 [shape = 's32[1]{0}', space=sflag, size = 0x4, scoped, tag = 'scoped memory for tpu_custom_call.1']
    #allocation4 [shape = 's32[1]{0}', space=sflag, size = 0x4, scoped, tag = 'scoped memory for tpu_custom_call.1']
    #allocation5 [shape = 'u8[557056]{0}', space=vmem, size = 0x88000, scoped, tag = 'input window, operand 1, single buffered']
    #allocation6 [shape = 's32[1]{0}', space=sflag, size = 0x4, scoped, tag = 'scoped memory for tpu_custom_call.1']
    #allocation7 [shape = 'u8[8704]{0}', space=vmem, size = 0x2400, scoped, tag = 'input window, operand 2, single buffered']
    #allocation8 [shape = 'u8[4096]{0}', space=vmem, size = 0x1000, scoped, tag = 'output window, operand 0, single buffered']
    %8 = vsyncpa [#allocation3], 0
    %9 = vsyncpa [#allocation6], 0
    %10 = vsyncpa [#allocation4], 0
    // Predicated region
    $region2: #{tpu_custom_call.1} parent=1 // pred_check
      _
    $region3: #{tpu_custom_call.1} parent=1 // pred_check_branch
      %12 = sbr.rel (0) target = $region5
    $region4: #{tpu_custom_call.1} parent=1 // pred_region
      %s14 = ssub.s32 64, 64
      %15 = vsyncadd [#allocation3], %s14
      %s17 = sshll.u32 [#allocation2], 4
      %s18 = int_to_ptr.vmem [resolvable:$true] %s17
      %20 = dma.hbm_to_vmem [thread:$0]  %s0, 64, %s18, [#allocation3]
    $region5: #{tpu_custom_call.1} parent=1 // pred_fallthru
      _
    // Predicated region
    $region6: #{tpu_custom_call.1} parent=1 // pred_check
      _
    $region7: #{tpu_custom_call.1} parent=1 // pred_check_branch
      %22 = sbr.rel (0) target = $region9
    $region8: #{tpu_custom_call.1} parent=1 // pred_region
      %s24 = ssub.s32 17408, 17408
      %25 = vsyncadd [#allocation6], %s24
      %s26 = sshll.u32 [#allocation5], 4
      %s27 = int_to_ptr.vmem [resolvable:$true] %s26
      %32 = dma.hbm_to_vmem [thread:$0]  %s1, 17408, %s27, [#allocation6], 64, 64, 4
    $region9: #{tpu_custom_call.1} parent=1 // pred_fallthru
      _
    // Predicated region
    $region10: #{tpu_custom_call.1} parent=1 // pred_check
      _
    $region11: #{tpu_custom_call.1} parent=1 // pred_check_branch
      %34 = sbr.rel (0) target = $region13
    $region12: #{tpu_custom_call.1} parent=1 // pred_region
      %s36 = ssub.s32 272, 272
      %37 = vsyncadd [#allocation6], %s36
      %s38 = sshll.u32 [#allocation7], 4
      %s39 = int_to_ptr.vmem [resolvable:$true] %s38
      %44 = dma.hbm_to_vmem [thread:$0]  %s2, 272, %s39, [#allocation6], 16, 16, 1
    $region13: #{tpu_custom_call.1} parent=1 // pred_fallthru
      _
    // Predicated region
    $region14: #{tpu_custom_call.1} parent=1 // pred_check
      _
    $region15: #{tpu_custom_call.1} parent=1 // pred_check_branch
      %46 = sbr.rel (0) target = $region17
    $region16: #{tpu_custom_call.1} parent=1 // pred_region
      %47 = dma.done [#allocation3], 64
    $region17: #{tpu_custom_call.1} parent=1 // pred_fallthru
      _
    // Predicated region
    $region18: #{tpu_custom_call.1} parent=1 // pred_check
      _
    $region19: #{tpu_custom_call.1} parent=1 // pred_check_branch
      %49 = sbr.rel (0) target = $region21
    $region20: #{tpu_custom_call.1} parent=1 // pred_region
      %50 = dma.done [#allocation6], 17408
    $region21: #{tpu_custom_call.1} parent=1 // pred_fallthru
      _
    // Predicated region
    $region22: #{tpu_custom_call.1} parent=1 // pred_check
      _
    $region23: #{tpu_custom_call.1} parent=1 // pred_check_branch
      %52 = sbr.rel (0) target = $region25
    $region24: #{tpu_custom_call.1} parent=1 // pred_region
      %53 = dma.done [#allocation6], 272
    $region25: #{tpu_custom_call.1} parent=1 // pred_fallthru
      _
    %v55 = vld [vmem:[#allocation2] sm:$0xf]
    %v56 = vld [vmem:[#allocation5] sm:$0xf]
    %v57 = vld [vmem:[#allocation5 + $0x4] sm:$0xf]
    %v58 = vld [vmem:[#allocation5 + $0x8] sm:$0xf]
    %v59 = vld [vmem:[#allocation5 + $0xc] sm:$0xf]
    %v60 = vld [vmem:[#allocation5 + $0x10] sm:$0xf]
    %v61 = vld [vmem:[#allocation5 + $0x14] sm:$0xf]
    %v62 = vld [vmem:[#allocation5 + $0x18] sm:$0xf]
    %v63 = vld [vmem:[#allocation5 + $0x1c] sm:$0xf]
    %v64 = vld [vmem:[#allocation5 + $0x20] sm:$0xf]
    %v65 = vld [vmem:[#allocation5 + $0x24] sm:$0xf]
    %v66 = vld [vmem:[#allocation5 + $0x28] sm:$0xf]
    %v67 = vld [vmem:[#allocation5 + $0x2c] sm:$0xf]
    %v68 = vld [vmem:[#allocation5 + $0x30] sm:$0xf]
    %v69 = vld [vmem:[#allocation5 + $0x34] sm:$0xf]
    %v70 = vld [vmem:[#allocation5 + $0x38] sm:$0xf]
    %v71 = vld [vmem:[#allocation5 + $0x3c] sm:$0xf]
    %v72 = vld [vmem:[#allocation7] sm:$0x1]
    %v74 = vlaneseq
    %v75 = vshrl.u32 %v74, 7
    %v76 = vsub.s32 0, %v75
    %v77 = vrot.slane %v72, %v76
    %v95 = vunpack.c.l.b16 %v56
    %v96 = vunpack.c.l.b16 %v57
    %v97 = vunpack.c.l.b16 %v58
    %v98 = vunpack.c.l.b16 %v59
    %v99 = vunpack.c.l.b16 %v60
    %v100 = vunpack.c.l.b16 %v61
    %v101 = vunpack.c.l.b16 %v62
    %v102 = vunpack.c.l.b16 %v63
    %v103 = vunpack.c.l.b16 %v64
    %v104 = vunpack.c.l.b16 %v65
    %v105 = vunpack.c.l.b16 %v66
    %v106 = vunpack.c.l.b16 %v67
    %v107 = vunpack.c.l.b16 %v68
    %v108 = vunpack.c.l.b16 %v69
    %v109 = vunpack.c.l.b16 %v70
    %v110 = vunpack.c.l.b16 %v71
    %v111 = vpack.c.b16 %v96, %v95
    %v112 = vpack.c.b16 %v98, %v97
    %v113 = vpack.c.b16 %v100, %v99
    %v114 = vpack.c.b16 %v102, %v101
    %v115 = vpack.c.b16 %v104, %v103
    %v116 = vpack.c.b16 %v106, %v105
    %v117 = vpack.c.b16 %v108, %v107
    %v118 = vpack.c.b16 %v110, %v109
    %127 = vmatprep.subr.bf16.mxu0 0
    %128 = vmatpush1.bf16.msra.mxu0 %v111
    %129 = vmatprep.subr.bf16.mxu0 0
    %130 = vmatpush1.bf16.msra.mxu0 %v112
    %131 = vmatprep.subr.bf16.mxu0 0
    %132 = vmatpush1.bf16.msra.mxu0 %v113
    %133 = vmatprep.subr.bf16.mxu0 0
    %134 = vmatpush1.bf16.msra.mxu0 %v114
    %135 = vmatprep.subr.bf16.mxu0 0
    %136 = vmatpush1.bf16.msra.mxu0 %v115
    %137 = vmatprep.subr.bf16.mxu0 0
    %138 = vmatpush1.bf16.msra.mxu0 %v116
    %139 = vmatprep.subr.bf16.mxu0 0
    %140 = vmatpush1.bf16.msra.mxu0 %v117
    %141 = vmatprep.subr.bf16.mxu0 0
    %142 = vmatpush1.bf16.msra.mxu0 %v118
    %143 = vmatprep.subr.bf16.mxu0 0
    %144 = vmatpush1.bf16.msra.mxu0 0
    %145 = vmatprep.subr.bf16.mxu0 0
    %146 = vmatpush1.bf16.msra.mxu0 0
    %147 = vmatprep.subr.bf16.mxu0 0
    %148 = vmatpush1.bf16.msra.mxu0 0
    %149 = vmatprep.subr.bf16.mxu0 0
    %150 = vmatpush1.bf16.msra.mxu0 0
    %151 = vmatprep.subr.bf16.mxu0 0
    %152 = vmatpush1.bf16.msra.mxu0 0
    %153 = vmatprep.subr.bf16.mxu0 0
    %154 = vmatpush1.bf16.msra.mxu0 0
    %155 = vmatprep.subr.bf16.mxu0 0
    %156 = vmatpush1.bf16.msra.mxu0 0
    %157 = vmatprep.subr.bf16.mxu0 0
    %158 = vmatpush1.bf16.msra.mxu0 0
    %159 = vmatprep.mubr.bf16.mxu0 0
    %160 = vmatmul.mubr.bf16.gmra.mrb[0].mxu0 %v55
    %v161 = vpop.f32.mrb[0].mxu0
    %v162 = vadd.f32 %v77, %v161
    %v163 = vpop.f32.mrb[0].mxu0
    %v164 = vpop.f32.mrb[0].mxu0
    %v165 = vpop.f32.mrb[0].mxu0
    %166 = vdwg.mxu0
    %v167 = vmax.f32 %v162, 0.0
    %v168 = vpack.c.bf16 %v167, %v167
    %s169 = scalar_lea.vmem [#allocation5], 64
    %v170 = vld [vmem:[%s169] sm:$0xf]
    %v171 = vld [vmem:[%s169 + $0x4] sm:$0xf]
    %v172 = vld [vmem:[%s169 + $0x8] sm:$0xf]
    %v173 = vld [vmem:[%s169 + $0xc] sm:$0xf]
    %v174 = vld [vmem:[%s169 + $0x10] sm:$0xf]
    %v175 = vld [vmem:[%s169 + $0x14] sm:$0xf]
    %v176 = vld [vmem:[%s169 + $0x18] sm:$0xf]
    %v177 = vld [vmem:[%s169 + $0x1c] sm:$0xf]
    %v178 = vld [vmem:[%s169 + $0x20] sm:$0xf]
    %v179 = vld [vmem:[%s169 + $0x24] sm:$0xf]
    %v180 = vld [vmem:[%s169 + $0x28] sm:$0xf]
    %v181 = vld [vmem:[%s169 + $0x2c] sm:$0xf]
    %v182 = vld [vmem:[%s169 + $0x30] sm:$0xf]
    %v183 = vld [vmem:[%s169 + $0x34] sm:$0xf]
    %v184 = vld [vmem:[%s169 + $0x38] sm:$0xf]
    %v185 = vld [vmem:[%s169 + $0x3c] sm:$0xf]
    %s186 = scalar_lea.vmem [#allocation7], 1
    %v187 = vld [vmem:[%s186] sm:$0x1]
    %v189 = vlaneseq
    %v190 = vshrl.u32 %v189, 7
    %v191 = vsub.s32 0, %v190
    %v192 = vrot.slane %v187, %v191
    %v210 = vunpack.c.l.b16 %v170
    %v211 = vunpack.c.l.b16 %v171
    %v212 = vunpack.c.l.b16 %v172
    %v213 = vunpack.c.l.b16 %v173
    %v214 = vunpack.c.l.b16 %v174
    %v215 = vunpack.c.l.b16 %v175
    %v216 = vunpack.c.l.b16 %v176
    %v217 = vunpack.c.l.b16 %v177
    %v218 = vunpack.c.l.b16 %v178
    %v219 = vunpack.c.l.b16 %v179
    %v220 = vunpack.c.l.b16 %v180
    %v221 = vunpack.c.l.b16 %v181
    %v222 = vunpack.c.l.b16 %v182
    %v223 = vunpack.c.l.b16 %v183
    %v224 = vunpack.c.l.b16 %v184
    %v225 = vunpack.c.l.b16 %v185
    %v226 = vpack.c.b16 %v211, %v210
    %v227 = vpack.c.b16 %v213, %v212
    %v228 = vpack.c.b16 %v215, %v214
    %v229 = vpack.c.b16 %v217, %v216
    %v230 = vpack.c.b16 %v219, %v218
    %v231 = vpack.c.b16 %v221, %v220
    %v232 = vpack.c.b16 %v223, %v222
    %v233 = vpack.c.b16 %v225, %v224
    %242 = vmatprep.subr.bf16.mxu0 0
    %243 = vmatpush1.bf16.msra.mxu0 %v226
    %244 = vmatprep.subr.bf16.mxu0 0
    %245 = vmatpush1.bf16.msra.mxu0 %v227
    %246 = vmatprep.subr.bf16.mxu0 0
    %247 = vmatpush1.bf16.msra.mxu0 %v228
    %248 = vmatprep.subr.bf16.mxu0 0
    %249 = vmatpush1.bf16.msra.mxu0 %v229
    %250 = vmatprep.subr.bf16.mxu0 0
    %251 = vmatpush1.bf16.msra.mxu0 %v230
    %252 = vmatprep.subr.bf16.mxu0 0
    %253 = vmatpush1.bf16.msra.mxu0 %v231
    %254 = vmatprep.subr.bf16.mxu0 0
    %255 = vmatpush1.bf16.msra.mxu0 %v232
    %256 = vmatprep.subr.bf16.mxu0 0
    %257 = vmatpush1.bf16.msra.mxu0 %v233
    %258 = vmatprep.subr.bf16.mxu0 0
    %259 = vmatpush1.bf16.msra.mxu0 0
    %260 = vmatprep.subr.bf16.mxu0 0
    %261 = vmatpush1.bf16.msra.mxu0 0
    %262 = vmatprep.subr.bf16.mxu0 0
    %263 = vmatpush1.bf16.msra.mxu0 0
    %264 = vmatprep.subr.bf16.mxu0 0
    %265 = vmatpush1.bf16.msra.mxu0 0
    %266 = vmatprep.subr.bf16.mxu0 0
    %267 = vmatpush1.bf16.msra.mxu0 0
    %268 = vmatprep.subr.bf16.mxu0 0
    %269 = vmatpush1.bf16.msra.mxu0 0
    %270 = vmatprep.subr.bf16.mxu0 0
    %271 = vmatpush1.bf16.msra.mxu0 0
    %272 = vmatprep.subr.bf16.mxu0 0
    %273 = vmatpush1.bf16.msra.mxu0 0
    %274 = vmatprep.mubr.bf16.mxu0 0
    %275 = vmatmul.mubr.bf16.gmra.mrb[0].mxu0 %v168
    %v276 = vpop.f32.mrb[0].mxu0
    %v277 = vadd.f32 %v192, %v276
    %v278 = vpop.f32.mrb[0].mxu0
    %v279 = vpop.f32.mrb[0].mxu0
    %v280 = vpop.f32.mrb[0].mxu0
    %281 = vdwg.mxu0
    %v282 = vmax.f32 %v277, 0.0
    %v283 = vpack.c.bf16 %v282, %v282
    %s284 = scalar_lea.vmem [#allocation5], 128
    %v285 = vld [vmem:[%s284] sm:$0xf]
    %v286 = vld [vmem:[%s284 + $0x4] sm:$0xf]
    %v287 = vld [vmem:[%s284 + $0x8] sm:$0xf]
    %v288 = vld [vmem:[%s284 + $0xc] sm:$0xf]
    %v289 = vld [vmem:[%s284 + $0x10] sm:$0xf]
    %v290 = vld [vmem:[%s284 + $0x14] sm:$0xf]
    %v291 = vld [vmem:[%s284 + $0x18] sm:$0xf]
    %v292 = vld [vmem:[%s284 + $0x1c] sm:$0xf]
    %v293 = vld [vmem:[%s284 + $0x20] sm:$0xf]
    %v294 = vld [vmem:[%s284 + $0x24] sm:$0xf]
    %v295 = vld [vmem:[%s284 + $0x28] sm:$0xf]
    %v296 = vld [vmem:[%s284 + $0x2c] sm:$0xf]
    %v297 = vld [vmem:[%s284 + $0x30] sm:$0xf]
    %v298 = vld [vmem:[%s284 + $0x34] sm:$0xf]
    %v299 = vld [vmem:[%s284 + $0x38] sm:$0xf]
    %v300 = vld [vmem:[%s284 + $0x3c] sm:$0xf]
    %s301 = scalar_lea.vmem [#allocation7], 2
    %v302 = vld [vmem:[%s301] sm:$0x1]
    %v304 = vlaneseq
    %v305 = vshrl.u32 %v304, 7
    %v306 = vsub.s32 0, %v305
    %v307 = vrot.slane %v302, %v306
    %v325 = vunpack.c.l.b16 %v285
    %v326 = vunpack.c.l.b16 %v286
    %v327 = vunpack.c.l.b16 %v287
    %v328 = vunpack.c.l.b16 %v288
    %v329 = vunpack.c.l.b16 %v289
    %v330 = vunpack.c.l.b16 %v290
    %v331 = vunpack.c.l.b16 %v291
    %v332 = vunpack.c.l.b16 %v292
    %v333 = vunpack.c.l.b16 %v293
    %v334 = vunpack.c.l.b16 %v294
    %v335 = vunpack.c.l.b16 %v295
    %v336 = vunpack.c.l.b16 %v296
    %v337 = vunpack.c.l.b16 %v297
    %v338 = vunpack.c.l.b16 %v298
    %v339 = vunpack.c.l.b16 %v299
    %v340 = vunpack.c.l.b16 %v300
    %v341 = vpack.c.b16 %v326, %v325
    %v342 = vpack.c.b16 %v328, %v327
    %v343 = vpack.c.b16 %v330, %v329
    %v344 = vpack.c.b16 %v332, %v331
    %v345 = vpack.c.b16 %v334, %v333
    %v346 = vpack.c.b16 %v336, %v335
    %v347 = vpack.c.b16 %v338, %v337
    %v348 = vpack.c.b16 %v340, %v339
    %357 = vmatprep.subr.bf16.mxu0 0
    %358 = vmatpush1.bf16.msra.mxu0 %v341
    %359 = vmatprep.subr.bf16.mxu0 0
    %360 = vmatpush1.bf16.msra.mxu0 %v342
    %361 = vmatprep.subr.bf16.mxu0 0
    %362 = vmatpush1.bf16.msra.mxu0 %v343
    %363 = vmatprep.subr.bf16.mxu0 0
    %364 = vmatpush1.bf16.msra.mxu0 %v344
    %365 = vmatprep.subr.bf16.mxu0 0
    %366 = vmatpush1.bf16.msra.mxu0 %v345
    %367 = vmatprep.subr.bf16.mxu0 0
    %368 = vmatpush1.bf16.msra.mxu0 %v346
    %369 = vmatprep.subr.bf16.mxu0 0
    %370 = vmatpush1.bf16.msra.mxu0 %v347
    %371 = vmatprep.subr.bf16.mxu0 0
    %372 = vmatpush1.bf16.msra.mxu0 %v348
    %373 = vmatprep.subr.bf16.mxu0 0
    %374 = vmatpush1.bf16.msra.mxu0 0
    %375 = vmatprep.subr.bf16.mxu0 0
    %376 = vmatpush1.bf16.msra.mxu0 0
    %377 = vmatprep.subr.bf16.mxu0 0
    %378 = vmatpush1.bf16.msra.mxu0 0
    %379 = vmatprep.subr.bf16.mxu0 0
    %380 = vmatpush1.bf16.msra.mxu0 0
    %381 = vmatprep.subr.bf16.mxu0 0
    %382 = vmatpush1.bf16.msra.mxu0 0
    %383 = vmatprep.subr.bf16.mxu0 0
    %384 = vmatpush1.bf16.msra.mxu0 0
    %385 = vmatprep.subr.bf16.mxu0 0
    %386 = vmatpush1.bf16.msra.mxu0 0
    %387 = vmatprep.subr.bf16.mxu0 0
    %388 = vmatpush1.bf16.msra.mxu0 0
    %389 = vmatprep.mubr.bf16.mxu0 0
    %390 = vmatmul.mubr.bf16.gmra.mrb[0].mxu0 %v283
    %v391 = vpop.f32.mrb[0].mxu0
    %v392 = vadd.f32 %v307, %v391
    %v393 = vpop.f32.mrb[0].mxu0
    %v394 = vpop.f32.mrb[0].mxu0
    %v395 = vpop.f32.mrb[0].mxu0
    %396 = vdwg.mxu0
    %v397 = vmax.f32 %v392, 0.0
    %v398 = vpack.c.bf16 %v397, %v397
    %s399 = scalar_lea.vmem [#allocation5], 192
    %v400 = vld [vmem:[%s399] sm:$0xf]
    %v401 = vld [vmem:[%s399 + $0x4] sm:$0xf]
    %v402 = vld [vmem:[%s399 + $0x8] sm:$0xf]
    %v403 = vld [vmem:[%s399 + $0xc] sm:$0xf]
    %v404 = vld [vmem:[%s399 + $0x10] sm:$0xf]
    %v405 = vld [vmem:[%s399 + $0x14] sm:$0xf]
    %v406 = vld [vmem:[%s399 + $0x18] sm:$0xf]
    %v407 = vld [vmem:[%s399 + $0x1c] sm:$0xf]
    %v408 = vld [vmem:[%s399 + $0x20] sm:$0xf]
    %v409 = vld [vmem:[%s399 + $0x24] sm:$0xf]
    %v410 = vld [vmem:[%s399 + $0x28] sm:$0xf]
    %v411 = vld [vmem:[%s399 + $0x2c] sm:$0xf]
    %v412 = vld [vmem:[%s399 + $0x30] sm:$0xf]
    %v413 = vld [vmem:[%s399 + $0x34] sm:$0xf]
    %v414 = vld [vmem:[%s399 + $0x38] sm:$0xf]
    %v415 = vld [vmem:[%s399 + $0x3c] sm:$0xf]
    %s416 = scalar_lea.vmem [#allocation7], 3
    %v417 = vld [vmem:[%s416] sm:$0x1]
    %v419 = vlaneseq
    %v420 = vshrl.u32 %v419, 7
    %v421 = vsub.s32 0, %v420
    %v422 = vrot.slane %v417, %v421
    %v440 = vunpack.c.l.b16 %v400
    %v441 = vunpack.c.l.b16 %v401
    %v442 = vunpack.c.l.b16 %v402
    %v443 = vunpack.c.l.b16 %v403
    %v444 = vunpack.c.l.b16 %v404
    %v445 = vunpack.c.l.b16 %v405
    %v446 = vunpack.c.l.b16 %v406
    %v447 = vunpack.c.l.b16 %v407
    %v448 = vunpack.c.l.b16 %v408
    %v449 = vunpack.c.l.b16 %v409
    %v450 = vunpack.c.l.b16 %v410
    %v451 = vunpack.c.l.b16 %v411
    %v452 = vunpack.c.l.b16 %v412
    %v453 = vunpack.c.l.b16 %v413
    %v454 = vunpack.c.l.b16 %v414
    %v455 = vunpack.c.l.b16 %v415
    %v456 = vpack.c.b16 %v441, %v440
    %v457 = vpack.c.b16 %v443, %v442
    %v458 = vpack.c.b16 %v445, %v444
    %v459 = vpack.c.b16 %v447, %v446
    %v460 = vpack.c.b16 %v449, %v448
    %v461 = vpack.c.b16 %v451, %v450
    %v462 = vpack.c.b16 %v453, %v452
    %v463 = vpack.c.b16 %v455, %v454
    %472 = vmatprep.subr.bf16.mxu0 0
    %473 = vmatpush1.bf16.msra.mxu0 %v456
    %474 = vmatprep.subr.bf16.mxu0 0
    %475 = vmatpush1.bf16.msra.mxu0 %v457
    %476 = vmatprep.subr.bf16.mxu0 0
    %477 = vmatpush1.bf16.msra.mxu0 %v458
    %478 = vmatprep.subr.bf16.mxu0 0
    %479 = vmatpush1.bf16.msra.mxu0 %v459
    %480 = vmatprep.subr.bf16.mxu0 0
    %481 = vmatpush1.bf16.msra.mxu0 %v460
    %482 = vmatprep.subr.bf16.mxu0 0
    %483 = vmatpush1.bf16.msra.mxu0 %v461
    %484 = vmatprep.subr.bf16.mxu0 0
    %485 = vmatpush1.bf16.msra.mxu0 %v462
    %486 = vmatprep.subr.bf16.mxu0 0
    %487 = vmatpush1.bf16.msra.mxu0 %v463
    %488 = vmatprep.subr.bf16.mxu0 0
    %489 = vmatpush1.bf16.msra.mxu0 0
    %490 = vmatprep.subr.bf16.mxu0 0
    %491 = vmatpush1.bf16.msra.mxu0 0
    %492 = vmatprep.subr.bf16.mxu0 0
    %493 = vmatpush1.bf16.msra.mxu0 0
    %494 = vmatprep.subr.bf16.mxu0 0
    %495 = vmatpush1.bf16.msra.mxu0 0
    %496 = vmatprep.subr.bf16.mxu0 0
    %497 = vmatpush1.bf16.msra.mxu0 0
    %498 = vmatprep.subr.bf16.mxu0 0
    %499 = vmatpush1.bf16.msra.mxu0 0
    %500 = vmatprep.subr.bf16.mxu0 0
    %501 = vmatpush1.bf16.msra.mxu0 0
    %502 = vmatprep.subr.bf16.mxu0 0
    %503 = vmatpush1.bf16.msra.mxu0 0
    %504 = vmatprep.mubr.bf16.mxu0 0
    %505 = vmatmul.mubr.bf16.gmra.mrb[0].mxu0 %v398
    %v506 = vpop.f32.mrb[0].mxu0
    %v507 = vadd.f32 %v422, %v506
    %v508 = vpop.f32.mrb[0].mxu0
    %v509 = vpop.f32.mrb[0].mxu0
    %v510 = vpop.f32.mrb[0].mxu0
    %511 = vdwg.mxu0
    %v512 = vmax.f32 %v507, 0.0
    %v513 = vpack.c.bf16 %v512, %v512
    %s514 = scalar_lea.vmem [#allocation5], 256
    %v515 = vld [vmem:[%s514] sm:$0xf]
    %v516 = vld [vmem:[%s514 + $0x4] sm:$0xf]
    %v517 = vld [vmem:[%s514 + $0x8] sm:$0xf]
    %v518 = vld [vmem:[%s514 + $0xc] sm:$0xf]
    %v519 = vld [vmem:[%s514 + $0x10] sm:$0xf]
    %v520 = vld [vmem:[%s514 + $0x14] sm:$0xf]
    %v521 = vld [vmem:[%s514 + $0x18] sm:$0xf]
    %v522 = vld [vmem:[%s514 + $0x1c] sm:$0xf]
    %v523 = vld [vmem:[%s514 + $0x20] sm:$0xf]
    %v524 = vld [vmem:[%s514 + $0x24] sm:$0xf]
    %v525 = vld [vmem:[%s514 + $0x28] sm:$0xf]
    %v526 = vld [vmem:[%s514 + $0x2c] sm:$0xf]
    %v527 = vld [vmem:[%s514 + $0x30] sm:$0xf]
    %v528 = vld [vmem:[%s514 + $0x34] sm:$0xf]
    %v529 = vld [vmem:[%s514 + $0x38] sm:$0xf]
    %v530 = vld [vmem:[%s514 + $0x3c] sm:$0xf]
    %s531 = scalar_lea.vmem [#allocation7], 4
    %v532 = vld [vmem:[%s531] sm:$0x1]
    %v534 = vlaneseq
    %v535 = vshrl.u32 %v534, 7
    %v536 = vsub.s32 0, %v535
    %v537 = vrot.slane %v532, %v536
    %v555 = vunpack.c.l.b16 %v515
    %v556 = vunpack.c.l.b16 %v516
    %v557 = vunpack.c.l.b16 %v517
    %v558 = vunpack.c.l.b16 %v518
    %v559 = vunpack.c.l.b16 %v519
    %v560 = vunpack.c.l.b16 %v520
    %v561 = vunpack.c.l.b16 %v521
    %v562 = vunpack.c.l.b16 %v522
    %v563 = vunpack.c.l.b16 %v523
    %v564 = vunpack.c.l.b16 %v524
    %v565 = vunpack.c.l.b16 %v525
    %v566 = vunpack.c.l.b16 %v526
    %v567 = vunpack.c.l.b16 %v527
    %v568 = vunpack.c.l.b16 %v528
    %v569 = vunpack.c.l.b16 %v529
    %v570 = vunpack.c.l.b16 %v530
    %v571 = vpack.c.b16 %v556, %v555
    %v572 = vpack.c.b16 %v558, %v557
    %v573 = vpack.c.b16 %v560, %v559
    %v574 = vpack.c.b16 %v562, %v561
    %v575 = vpack.c.b16 %v564, %v563
    %v576 = vpack.c.b16 %v566, %v565
    %v577 = vpack.c.b16 %v568, %v567
    %v578 = vpack.c.b16 %v570, %v569
    %587 = vmatprep.subr.bf16.mxu0 0
    %588 = vmatpush1.bf16.msra.mxu0 %v571
    %589 = vmatprep.subr.bf16.mxu0 0
    %590 = vmatpush1.bf16.msra.mxu0 %v572
    %591 = vmatprep.subr.bf16.mxu0 0
    %592 = vmatpush1.bf16.msra.mxu0 %v573
    %593 = vmatprep.subr.bf16.mxu0 0
    %594 = vmatpush1.bf16.msra.mxu0 %v574
    %595 = vmatprep.subr.bf16.mxu0 0
    %596 = vmatpush1.bf16.msra.mxu0 %v575
    %597 = vmatprep.subr.bf16.mxu0 0
    %598 = vmatpush1.bf16.msra.mxu0 %v576
    %599 = vmatprep.subr.bf16.mxu0 0
    %600 = vmatpush1.bf16.msra.mxu0 %v577
    %601 = vmatprep.subr.bf16.mxu0 0
    %602 = vmatpush1.bf16.msra.mxu0 %v578
    %603 = vmatprep.subr.bf16.mxu0 0
    %604 = vmatpush1.bf16.msra.mxu0 0
    %605 = vmatprep.subr.bf16.mxu0 0
    %606 = vmatpush1.bf16.msra.mxu0 0
    %607 = vmatprep.subr.bf16.mxu0 0
    %608 = vmatpush1.bf16.msra.mxu0 0
    %609 = vmatprep.subr.bf16.mxu0 0
    %610 = vmatpush1.bf16.msra.mxu0 0
    %611 = vmatprep.subr.bf16.mxu0 0
    %612 = vmatpush1.bf16.msra.mxu0 0
    %613 = vmatprep.subr.bf16.mxu0 0
    %614 = vmatpush1.bf16.msra.mxu0 0
    %615 = vmatprep.subr.bf16.mxu0 0
    %616 = vmatpush1.bf16.msra.mxu0 0
    %617 = vmatprep.subr.bf16.mxu0 0
    %618 = vmatpush1.bf16.msra.mxu0 0
    %619 = vmatprep.mubr.bf16.mxu0 0
    %620 = vmatmul.mubr.bf16.gmra.mrb[0].mxu0 %v513
    %v621 = vpop.f32.mrb[0].mxu0
    %v622 = vadd.f32 %v537, %v621
    %v623 = vpop.f32.mrb[0].mxu0
    %v624 = vpop.f32.mrb[0].mxu0
    %v625 = vpop.f32.mrb[0].mxu0
    %626 = vdwg.mxu0
    %v627 = vmax.f32 %v622, 0.0
    %v628 = vpack.c.bf16 %v627, %v627
    %s629 = scalar_lea.vmem [#allocation5], 320
    %v630 = vld [vmem:[%s629] sm:$0xf]
    %v631 = vld [vmem:[%s629 + $0x4] sm:$0xf]
    %v632 = vld [vmem:[%s629 + $0x8] sm:$0xf]
    %v633 = vld [vmem:[%s629 + $0xc] sm:$0xf]
    %v634 = vld [vmem:[%s629 + $0x10] sm:$0xf]
    %v635 = vld [vmem:[%s629 + $0x14] sm:$0xf]
    %v636 = vld [vmem:[%s629 + $0x18] sm:$0xf]
    %v637 = vld [vmem:[%s629 + $0x1c] sm:$0xf]
    %v638 = vld [vmem:[%s629 + $0x20] sm:$0xf]
    %v639 = vld [vmem:[%s629 + $0x24] sm:$0xf]
    %v640 = vld [vmem:[%s629 + $0x28] sm:$0xf]
    %v641 = vld [vmem:[%s629 + $0x2c] sm:$0xf]
    %v642 = vld [vmem:[%s629 + $0x30] sm:$0xf]
    %v643 = vld [vmem:[%s629 + $0x34] sm:$0xf]
    %v644 = vld [vmem:[%s629 + $0x38] sm:$0xf]
    %v645 = vld [vmem:[%s629 + $0x3c] sm:$0xf]
    %s646 = scalar_lea.vmem [#allocation7], 5
    %v647 = vld [vmem:[%s646] sm:$0x1]
    %v649 = vlaneseq
    %v650 = vshrl.u32 %v649, 7
    %v651 = vsub.s32 0, %v650
    %v652 = vrot.slane %v647, %v651
    %v670 = vunpack.c.l.b16 %v630
    %v671 = vunpack.c.l.b16 %v631
    %v672 = vunpack.c.l.b16 %v632
    %v673 = vunpack.c.l.b16 %v633
    %v674 = vunpack.c.l.b16 %v634
    %v675 = vunpack.c.l.b16 %v635
    %v676 = vunpack.c.l.b16 %v636
    %v677 = vunpack.c.l.b16 %v637
    %v678 = vunpack.c.l.b16 %v638
    %v679 = vunpack.c.l.b16 %v639
    %v680 = vunpack.c.l.b16 %v640
    %v681 = vunpack.c.l.b16 %v641
    %v682 = vunpack.c.l.b16 %v642
    %v683 = vunpack.c.l.b16 %v643
    %v684 = vunpack.c.l.b16 %v644
    %v685 = vunpack.c.l.b16 %v645
    %v686 = vpack.c.b16 %v671, %v670
    %v687 = vpack.c.b16 %v673, %v672
    %v688 = vpack.c.b16 %v675, %v674
    %v689 = vpack.c.b16 %v677, %v676
    %v690 = vpack.c.b16 %v679, %v678
    %v691 = vpack.c.b16 %v681, %v680
    %v692 = vpack.c.b16 %v683, %v682
    %v693 = vpack.c.b16 %v685, %v684
    %702 = vmatprep.subr.bf16.mxu0 0
    %703 = vmatpush1.bf16.msra.mxu0 %v686
    %704 = vmatprep.subr.bf16.mxu0 0
    %705 = vmatpush1.bf16.msra.mxu0 %v687
    %706 = vmatprep.subr.bf16.mxu0 0
    %707 = vmatpush1.bf16.msra.mxu0 %v688
    %708 = vmatprep.subr.bf16.mxu0 0
    %709 = vmatpush1.bf16.msra.mxu0 %v689
    %710 = vmatprep.subr.bf16.mxu0 0
    %711 = vmatpush1.bf16.msra.mxu0 %v690
    %712 = vmatprep.subr.bf16.mxu0 0
    %713 = vmatpush1.bf16.msra.mxu0 %v691
    %714 = vmatprep.subr.bf16.mxu0 0
    %715 = vmatpush1.bf16.msra.mxu0 %v692
    %716 = vmatprep.subr.bf16.mxu0 0
    %717 = vmatpush1.bf16.msra.mxu0 %v693
    %718 = vmatprep.subr.bf16.mxu0 0
    %719 = vmatpush1.bf16.msra.mxu0 0
    %720 = vmatprep.subr.bf16.mxu0 0
    %721 = vmatpush1.bf16.msra.mxu0 0
    %722 = vmatprep.subr.bf16.mxu0 0
    %723 = vmatpush1.bf16.msra.mxu0 0
    %724 = vmatprep.subr.bf16.mxu0 0
    %725 = vmatpush1.bf16.msra.mxu0 0
    %726 = vmatprep.subr.bf16.mxu0 0
    %727 = vmatpush1.bf16.msra.mxu0 0
    %728 = vmatprep.subr.bf16.mxu0 0
    %729 = vmatpush1.bf16.msra.mxu0 0
    %730 = vmatprep.subr.bf16.mxu0 0
    %731 = vmatpush1.bf16.msra.mxu0 0
    %732 = vmatprep.subr.bf16.mxu0 0
    %733 = vmatpush1.bf16.msra.mxu0 0
    %734 = vmatprep.mubr.bf16.mxu0 0
    %735 = vmatmul.mubr.bf16.gmra.mrb[0].mxu0 %v628
    %v736 = vpop.f32.mrb[0].mxu0
    %v737 = vadd.f32 %v652, %v736
    %v738 = vpop.f32.mrb[0].mxu0
    %v739 = vpop.f32.mrb[0].mxu0
    %v740 = vpop.f32.mrb[0].mxu0
    %741 = vdwg.mxu0
    %v742 = vmax.f32 %v737, 0.0
    %v743 = vpack.c.bf16 %v742, %v742
    %s744 = scalar_lea.vmem [#allocation5], 384
    %v745 = vld [vmem:[%s744] sm:$0xf]
    %v746 = vld [vmem:[%s744 + $0x4] sm:$0xf]
    %v747 = vld [vmem:[%s744 + $0x8] sm:$0xf]
    %v748 = vld [vmem:[%s744 + $0xc] sm:$0xf]
    %v749 = vld [vmem:[%s744 + $0x10] sm:$0xf]
    %v750 = vld [vmem:[%s744 + $0x14] sm:$0xf]
    %v751 = vld [vmem:[%s744 + $0x18] sm:$0xf]
    %v752 = vld [vmem:[%s744 + $0x1c] sm:$0xf]
    %v753 = vld [vmem:[%s744 + $0x20] sm:$0xf]
    %v754 = vld [vmem:[%s744 + $0x24] sm:$0xf]
    %v755 = vld [vmem:[%s744 + $0x28] sm:$0xf]
    %v756 = vld [vmem:[%s744 + $0x2c] sm:$0xf]
    %v757 = vld [vmem:[%s744 + $0x30] sm:$0xf]
    %v758 = vld [vmem:[%s744 + $0x34] sm:$0xf]
    %v759 = vld [vmem:[%s744 + $0x38] sm:$0xf]
    %v760 = vld [vmem:[%s744 + $0x3c] sm:$0xf]
    %s761 = scalar_lea.vmem [#allocation7], 6
    %v762 = vld [vmem:[%s761] sm:$0x1]
    %v764 = vlaneseq
    %v765 = vshrl.u32 %v764, 7
    %v766 = vsub.s32 0, %v765
    %v767 = vrot.slane %v762, %v766
    %v785 = vunpack.c.l.b16 %v745
    %v786 = vunpack.c.l.b16 %v746
    %v787 = vunpack.c.l.b16 %v747
    %v788 = vunpack.c.l.b16 %v748
    %v789 = vunpack.c.l.b16 %v749
    %v790 = vunpack.c.l.b16 %v750
    %v791 = vunpack.c.l.b16 %v751
    %v792 = vunpack.c.l.b16 %v752
    %v793 = vunpack.c.l.b16 %v753
    %v794 = vunpack.c.l.b16 %v754
    %v795 = vunpack.c.l.b16 %v755
    %v796 = vunpack.c.l.b16 %v756
    %v797 = vunpack.c.l.b16 %v757
    %v798 = vunpack.c.l.b16 %v758
    %v799 = vunpack.c.l.b16 %v759
    %v800 = vunpack.c.l.b16 %v760
    %v801 = vpack.c.b16 %v786, %v785
    %v802 = vpack.c.b16 %v788, %v787
    %v803 = vpack.c.b16 %v790, %v789
    %v804 = vpack.c.b16 %v792, %v791
    %v805 = vpack.c.b16 %v794, %v793
    %v806 = vpack.c.b16 %v796, %v795
    %v807 = vpack.c.b16 %v798, %v797
    %v808 = vpack.c.b16 %v800, %v799
    %817 = vmatprep.subr.bf16.mxu0 0
    %818 = vmatpush1.bf16.msra.mxu0 %v801
    %819 = vmatprep.subr.bf16.mxu0 0
    %820 = vmatpush1.bf16.msra.mxu0 %v802
    %821 = vmatprep.subr.bf16.mxu0 0
    %822 = vmatpush1.bf16.msra.mxu0 %v803
    %823 = vmatprep.subr.bf16.mxu0 0
    %824 = vmatpush1.bf16.msra.mxu0 %v804
    %825 = vmatprep.subr.bf16.mxu0 0
    %826 = vmatpush1.bf16.msra.mxu0 %v805
    %827 = vmatprep.subr.bf16.mxu0 0
    %828 = vmatpush1.bf16.msra.mxu0 %v806
    %829 = vmatprep.subr.bf16.mxu0 0
    %830 = vmatpush1.bf16.msra.mxu0 %v807
    %831 = vmatprep.subr.bf16.mxu0 0
    %832 = vmatpush1.bf16.msra.mxu0 %v808
    %833 = vmatprep.subr.bf16.mxu0 0
    %834 = vmatpush1.bf16.msra.mxu0 0
    %835 = vmatprep.subr.bf16.mxu0 0
    %836 = vmatpush1.bf16.msra.mxu0 0
    %837 = vmatprep.subr.bf16.mxu0 0
    %838 = vmatpush1.bf16.msra.mxu0 0
    %839 = vmatprep.subr.bf16.mxu0 0
    %840 = vmatpush1.bf16.msra.mxu0 0
    %841 = vmatprep.subr.bf16.mxu0 0
    %842 = vmatpush1.bf16.msra.mxu0 0
    %843 = vmatprep.subr.bf16.mxu0 0
    %844 = vmatpush1.bf16.msra.mxu0 0
    %845 = vmatprep.subr.bf16.mxu0 0
    %846 = vmatpush1.bf16.msra.mxu0 0
    %847 = vmatprep.subr.bf16.mxu0 0
    %848 = vmatpush1.bf16.msra.mxu0 0
    %849 = vmatprep.mubr.bf16.mxu0 0
    %850 = vmatmul.mubr.bf16.gmra.mrb[0].mxu0 %v743
    %v851 = vpop.f32.mrb[0].mxu0
    %v852 = vadd.f32 %v767, %v851
    %v853 = vpop.f32.mrb[0].mxu0
    %v854 = vpop.f32.mrb[0].mxu0
    %v855 = vpop.f32.mrb[0].mxu0
    %856 = vdwg.mxu0
    %v857 = vmax.f32 %v852, 0.0
    %v858 = vpack.c.bf16 %v857, %v857
    %s859 = scalar_lea.vmem [#allocation5], 448
    %v860 = vld [vmem:[%s859] sm:$0xf]
    %v861 = vld [vmem:[%s859 + $0x4] sm:$0xf]
    %v862 = vld [vmem:[%s859 + $0x8] sm:$0xf]
    %v863 = vld [vmem:[%s859 + $0xc] sm:$0xf]
    %v864 = vld [vmem:[%s859 + $0x10] sm:$0xf]
    %v865 = vld [vmem:[%s859 + $0x14] sm:$0xf]
    %v866 = vld [vmem:[%s859 + $0x18] sm:$0xf]
    %v867 = vld [vmem:[%s859 + $0x1c] sm:$0xf]
    %v868 = vld [vmem:[%s859 + $0x20] sm:$0xf]
    %v869 = vld [vmem:[%s859 + $0x24] sm:$0xf]
    %v870 = vld [vmem:[%s859 + $0x28] sm:$0xf]
    %v871 = vld [vmem:[%s859 + $0x2c] sm:$0xf]
    %v872 = vld [vmem:[%s859 + $0x30] sm:$0xf]
    %v873 = vld [vmem:[%s859 + $0x34] sm:$0xf]
    %v874 = vld [vmem:[%s859 + $0x38] sm:$0xf]
    %v875 = vld [vmem:[%s859 + $0x3c] sm:$0xf]
    %s876 = scalar_lea.vmem [#allocation7], 7
    %v877 = vld [vmem:[%s876] sm:$0x1]
    %v879 = vlaneseq
    %v880 = vshrl.u32 %v879, 7
    %v881 = vsub.s32 0, %v880
    %v882 = vrot.slane %v877, %v881
    %v900 = vunpack.c.l.b16 %v860
    %v901 = vunpack.c.l.b16 %v861
    %v902 = vunpack.c.l.b16 %v862
    %v903 = vunpack.c.l.b16 %v863
    %v904 = vunpack.c.l.b16 %v864
    %v905 = vunpack.c.l.b16 %v865
    %v906 = vunpack.c.l.b16 %v866
    %v907 = vunpack.c.l.b16 %v867
    %v908 = vunpack.c.l.b16 %v868
    %v909 = vunpack.c.l.b16 %v869
    %v910 = vunpack.c.l.b16 %v870
    %v911 = vunpack.c.l.b16 %v871
    %v912 = vunpack.c.l.b16 %v872
    %v913 = vunpack.c.l.b16 %v873
    %v914 = vunpack.c.l.b16 %v874
    %v915 = vunpack.c.l.b16 %v875
    %v916 = vpack.c.b16 %v901, %v900
    %v917 = vpack.c.b16 %v903, %v902
    %v918 = vpack.c.b16 %v905, %v904
    %v919 = vpack.c.b16 %v907, %v906
    %v920 = vpack.c.b16 %v909, %v908
    %v921 = vpack.c.b16 %v911, %v910
    %v922 = vpack.c.b16 %v913, %v912
    %v923 = vpack.c.b16 %v915, %v914
    %932 = vmatprep.subr.bf16.mxu0 0
    %933 = vmatpush1.bf16.msra.mxu0 %v916
    %934 = vmatprep.subr.bf16.mxu0 0
    %935 = vmatpush1.bf16.msra.mxu0 %v917
    %936 = vmatprep.subr.bf16.mxu0 0
    %937 = vmatpush1.bf16.msra.mxu0 %v918
    %938 = vmatprep.subr.bf16.mxu0 0
    %939 = vmatpush1.bf16.msra.mxu0 %v919
    %940 = vmatprep.subr.bf16.mxu0 0
    %941 = vmatpush1.bf16.msra.mxu0 %v920
    %942 = vmatprep.subr.bf16.mxu0 0
    %943 = vmatpush1.bf16.msra.mxu0 %v921
    %944 = vmatprep.subr.bf16.mxu0 0
    %945 = vmatpush1.bf16.msra.mxu0 %v922
    %946 = vmatprep.subr.bf16.mxu0 0
    %947 = vmatpush1.bf16.msra.mxu0 %v923
    %948 = vmatprep.subr.bf16.mxu0 0
    %949 = vmatpush1.bf16.msra.mxu0 0
    %950 = vmatprep.subr.bf16.mxu0 0
    %951 = vmatpush1.bf16.msra.mxu0 0
    %952 = vmatprep.subr.bf16.mxu0 0
    %953 = vmatpush1.bf16.msra.mxu0 0
    %954 = vmatprep.subr.bf16.mxu0 0
    %955 = vmatpush1.bf16.msra.mxu0 0
    %956 = vmatprep.subr.bf16.mxu0 0
    %957 = vmatpush1.bf16.msra.mxu0 0
    %958 = vmatprep.subr.bf16.mxu0 0
    %959 = vmatpush1.bf16.msra.mxu0 0
    %960 = vmatprep.subr.bf16.mxu0 0
    %961 = vmatpush1.bf16.msra.mxu0 0
    %962 = vmatprep.subr.bf16.mxu0 0
    %963 = vmatpush1.bf16.msra.mxu0 0
    %964 = vmatprep.mubr.bf16.mxu0 0
    %965 = vmatmul.mubr.bf16.gmra.mrb[0].mxu0 %v858
    %v966 = vpop.f32.mrb[0].mxu0
    %v967 = vadd.f32 %v882, %v966
    %v968 = vpop.f32.mrb[0].mxu0
    %v969 = vpop.f32.mrb[0].mxu0
    %v970 = vpop.f32.mrb[0].mxu0
    %971 = vdwg.mxu0
    %v972 = vmax.f32 %v967, 0.0
    %v973 = vpack.c.bf16 %v972, %v972
    %s974 = scalar_lea.vmem [#allocation5], 512
    %v975 = vld [vmem:[%s974] sm:$0xf]
    %v976 = vld [vmem:[%s974 + $0x4] sm:$0xf]
    %v977 = vld [vmem:[%s974 + $0x8] sm:$0xf]
    %v978 = vld [vmem:[%s974 + $0xc] sm:$0xf]
    %v979 = vld [vmem:[%s974 + $0x10] sm:$0xf]
    %v980 = vld [vmem:[%s974 + $0x14] sm:$0xf]
    %v981 = vld [vmem:[%s974 + $0x18] sm:$0xf]
    %v982 = vld [vmem:[%s974 + $0x1c] sm:$0xf]
    %v983 = vld [vmem:[%s974 + $0x20] sm:$0xf]
    %v984 = vld [vmem:[%s974 + $0x24] sm:$0xf]
    %v985 = vld [vmem:[%s974 + $0x28] sm:$0xf]
    %v986 = vld [vmem:[%s974 + $0x2c] sm:$0xf]
    %v987 = vld [vmem:[%s974 + $0x30] sm:$0xf]
    %v988 = vld [vmem:[%s974 + $0x34] sm:$0xf]
    %v989 = vld [vmem:[%s974 + $0x38] sm:$0xf]
    %v990 = vld [vmem:[%s974 + $0x3c] sm:$0xf]
    %s991 = scalar_lea.vmem [#allocation7], 8
    %v992 = vld [vmem:[%s991] sm:$0x1]
    %v994 = vlaneseq
    %v995 = vshrl.u32 %v994, 7
    %v996 = vsub.s32 0, %v995
    %v997 = vrot.slane %v992, %v996
    %v1015 = vunpack.c.l.b16 %v975
    %v1016 = vunpack.c.l.b16 %v976
    %v1017 = vunpack.c.l.b16 %v977
    %v1018 = vunpack.c.l.b16 %v978
    %v1019 = vunpack.c.l.b16 %v979
    %v1020 = vunpack.c.l.b16 %v980
    %v1021 = vunpack.c.l.b16 %v981
    %v1022 = vunpack.c.l.b16 %v982
    %v1023 = vunpack.c.l.b16 %v983
    %v1024 = vunpack.c.l.b16 %v984
    %v1025 = vunpack.c.l.b16 %v985
    %v1026 = vunpack.c.l.b16 %v986
    %v1027 = vunpack.c.l.b16 %v987
    %v1028 = vunpack.c.l.b16 %v988
    %v1029 = vunpack.c.l.b16 %v989
    %v1030 = vunpack.c.l.b16 %v990
    %v1031 = vpack.c.b16 %v1016, %v1015
    %v1032 = vpack.c.b16 %v1018, %v1017
    %v1033 = vpack.c.b16 %v1020, %v1019
    %v1034 = vpack.c.b16 %v1022, %v1021
    %v1035 = vpack.c.b16 %v1024, %v1023
    %v1036 = vpack.c.b16 %v1026, %v1025
    %v1037 = vpack.c.b16 %v1028, %v1027
    %v1038 = vpack.c.b16 %v1030, %v1029
    %1047 = vmatprep.subr.bf16.mxu0 0
    %1048 = vmatpush1.bf16.msra.mxu0 %v1031
    %1049 = vmatprep.subr.bf16.mxu0 0
    %1050 = vmatpush1.bf16.msra.mxu0 %v1032
    %1051 = vmatprep.subr.bf16.mxu0 0
    %1052 = vmatpush1.bf16.msra.mxu0 %v1033
    %1053 = vmatprep.subr.bf16.mxu0 0
    %1054 = vmatpush1.bf16.msra.mxu0 %v1034
    %1055 = vmatprep.subr.bf16.mxu0 0
    %1056 = vmatpush1.bf16.msra.mxu0 %v1035
    %1057 = vmatprep.subr.bf16.mxu0 0
    %1058 = vmatpush1.bf16.msra.mxu0 %v1036
    %1059 = vmatprep.subr.bf16.mxu0 0
    %1060 = vmatpush1.bf16.msra.mxu0 %v1037
    %1061 = vmatprep.subr.bf16.mxu0 0
    %1062 = vmatpush1.bf16.msra.mxu0 %v1038
    %1063 = vmatprep.subr.bf16.mxu0 0
    %1064 = vmatpush1.bf16.msra.mxu0 0
    %1065 = vmatprep.subr.bf16.mxu0 0
    %1066 = vmatpush1.bf16.msra.mxu0 0
    %1067 = vmatprep.subr.bf16.mxu0 0
    %1068 = vmatpush1.bf16.msra.mxu0 0
    %1069 = vmatprep.subr.bf16.mxu0 0
    %1070 = vmatpush1.bf16.msra.mxu0 0
    %1071 = vmatprep.subr.bf16.mxu0 0
    %1072 = vmatpush1.bf16.msra.mxu0 0
    %1073 = vmatprep.subr.bf16.mxu0 0
    %1074 = vmatpush1.bf16.msra.mxu0 0
    %1075 = vmatprep.subr.bf16.mxu0 0
    %1076 = vmatpush1.bf16.msra.mxu0 0
    %1077 = vmatprep.subr.bf16.mxu0 0
    %1078 = vmatpush1.bf16.msra.mxu0 0
    %1079 = vmatprep.mubr.bf16.mxu0 0
    %1080 = vmatmul.mubr.bf16.gmra.mrb[0].mxu0 %v973
    %v1081 = vpop.f32.mrb[0].mxu0
    %v1082 = vadd.f32 %v997, %v1081
    %v1083 = vpop.f32.mrb[0].mxu0
    %v1084 = vpop.f32.mrb[0].mxu0
    %v1085 = vpop.f32.mrb[0].mxu0
    %1086 = vdwg.mxu0
    %v1087 = vmax.f32 %v1082, 0.0
    %v1088 = vpack.c.bf16 %v1087, %v1087
    %s1089 = scalar_lea.vmem [#allocation5], 576
    %v1090 = vld [vmem:[%s1089] sm:$0xf]
    %v1091 = vld [vmem:[%s1089 + $0x4] sm:$0xf]
    %v1092 = vld [vmem:[%s1089 + $0x8] sm:$0xf]
    %v1093 = vld [vmem:[%s1089 + $0xc] sm:$0xf]
    %v1094 = vld [vmem:[%s1089 + $0x10] sm:$0xf]
    %v1095 = vld [vmem:[%s1089 + $0x14] sm:$0xf]
    %v1096 = vld [vmem:[%s1089 + $0x18] sm:$0xf]
    %v1097 = vld [vmem:[%s1089 + $0x1c] sm:$0xf]
    %v1098 = vld [vmem:[%s1089 + $0x20] sm:$0xf]
    %v1099 = vld [vmem:[%s1089 + $0x24] sm:$0xf]
    %v1100 = vld [vmem:[%s1089 + $0x28] sm:$0xf]
    %v1101 = vld [vmem:[%s1089 + $0x2c] sm:$0xf]
    %v1102 = vld [vmem:[%s1089 + $0x30] sm:$0xf]
    %v1103 = vld [vmem:[%s1089 + $0x34] sm:$0xf]
    %v1104 = vld [vmem:[%s1089 + $0x38] sm:$0xf]
    %v1105 = vld [vmem:[%s1089 + $0x3c] sm:$0xf]
    %s1106 = scalar_lea.vmem [#allocation7], 9
    %v1107 = vld [vmem:[%s1106] sm:$0x1]
    %v1109 = vlaneseq
    %v1110 = vshrl.u32 %v1109, 7
    %v1111 = vsub.s32 0, %v1110
    %v1112 = vrot.slane %v1107, %v1111
    %v1130 = vunpack.c.l.b16 %v1090
    %v1131 = vunpack.c.l.b16 %v1091
    %v1132 = vunpack.c.l.b16 %v1092
    %v1133 = vunpack.c.l.b16 %v1093
    %v1134 = vunpack.c.l.b16 %v1094
    %v1135 = vunpack.c.l.b16 %v1095
    %v1136 = vunpack.c.l.b16 %v1096
    %v1137 = vunpack.c.l.b16 %v1097
    %v1138 = vunpack.c.l.b16 %v1098
    %v1139 = vunpack.c.l.b16 %v1099
    %v1140 = vunpack.c.l.b16 %v1100
    %v1141 = vunpack.c.l.b16 %v1101
    %v1142 = vunpack.c.l.b16 %v1102
    %v1143 = vunpack.c.l.b16 %v1103
    %v1144 = vunpack.c.l.b16 %v1104
    %v1145 = vunpack.c.l.b16 %v1105
    %v1146 = vpack.c.b16 %v1131, %v1130
    %v1147 = vpack.c.b16 %v1133, %v1132
    %v1148 = vpack.c.b16 %v1135, %v1134
    %v1149 = vpack.c.b16 %v1137, %v1136
    %v1150 = vpack.c.b16 %v1139, %v1138
    %v1151 = vpack.c.b16 %v1141, %v1140
    %v1152 = vpack.c.b16 %v1143, %v1142
    %v1153 = vpack.c.b16 %v1145, %v1144
    %1162 = vmatprep.subr.bf16.mxu0 0
    %1163 = vmatpush1.bf16.msra.mxu0 %v1146
    %1164 = vmatprep.subr.bf16.mxu0 0
    %1165 = vmatpush1.bf16.msra.mxu0 %v1147
    %1166 = vmatprep.subr.bf16.mxu0 0
    %1167 = vmatpush1.bf16.msra.mxu0 %v1148
    %1168 = vmatprep.subr.bf16.mxu0 0
    %1169 = vmatpush1.bf16.msra.mxu0 %v1149
    %1170 = vmatprep.subr.bf16.mxu0 0
    %1171 = vmatpush1.bf16.msra.mxu0 %v1150
    %1172 = vmatprep.subr.bf16.mxu0 0
    %1173 = vmatpush1.bf16.msra.mxu0 %v1151
    %1174 = vmatprep.subr.bf16.mxu0 0
    %1175 = vmatpush1.bf16.msra.mxu0 %v1152
    %1176 = vmatprep.subr.bf16.mxu0 0
    %1177 = vmatpush1.bf16.msra.mxu0 %v1153
    %1178 = vmatprep.subr.bf16.mxu0 0
    %1179 = vmatpush1.bf16.msra.mxu0 0
    %1180 = vmatprep.subr.bf16.mxu0 0
    %1181 = vmatpush1.bf16.msra.mxu0 0
    %1182 = vmatprep.subr.bf16.mxu0 0
    %1183 = vmatpush1.bf16.msra.mxu0 0
    %1184 = vmatprep.subr.bf16.mxu0 0
    %1185 = vmatpush1.bf16.msra.mxu0 0
    %1186 = vmatprep.subr.bf16.mxu0 0
    %1187 = vmatpush1.bf16.msra.mxu0 0
    %1188 = vmatprep.subr.bf16.mxu0 0
    %1189 = vmatpush1.bf16.msra.mxu0 0
    %1190 = vmatprep.subr.bf16.mxu0 0
    %1191 = vmatpush1.bf16.msra.mxu0 0
    %1192 = vmatprep.subr.bf16.mxu0 0
    %1193 = vmatpush1.bf16.msra.mxu0 0
    %1194 = vmatprep.mubr.bf16.mxu0 0
    %1195 = vmatmul.mubr.bf16.gmra.mrb[0].mxu0 %v1088
    %v1196 = vpop.f32.mrb[0].mxu0
    %v1197 = vadd.f32 %v1112, %v1196
    %v1198 = vpop.f32.mrb[0].mxu0
    %v1199 = vpop.f32.mrb[0].mxu0
    %v1200 = vpop.f32.mrb[0].mxu0
    %1201 = vdwg.mxu0
    %v1202 = vmax.f32 %v1197, 0.0
    %v1203 = vpack.c.bf16 %v1202, %v1202
    %s1204 = scalar_lea.vmem [#allocation5], 640
    %v1205 = vld [vmem:[%s1204] sm:$0xf]
    %v1206 = vld [vmem:[%s1204 + $0x4] sm:$0xf]
    %v1207 = vld [vmem:[%s1204 + $0x8] sm:$0xf]
    %v1208 = vld [vmem:[%s1204 + $0xc] sm:$0xf]
    %v1209 = vld [vmem:[%s1204 + $0x10] sm:$0xf]
    %v1210 = vld [vmem:[%s1204 + $0x14] sm:$0xf]
    %v1211 = vld [vmem:[%s1204 + $0x18] sm:$0xf]
    %v1212 = vld [vmem:[%s1204 + $0x1c] sm:$0xf]
    %v1213 = vld [vmem:[%s1204 + $0x20] sm:$0xf]
    %v1214 = vld [vmem:[%s1204 + $0x24] sm:$0xf]
    %v1215 = vld [vmem:[%s1204 + $0x28] sm:$0xf]
    %v1216 = vld [vmem:[%s1204 + $0x2c] sm:$0xf]
    %v1217 = vld [vmem:[%s1204 + $0x30] sm:$0xf]
    %v1218 = vld [vmem:[%s1204 + $0x34] sm:$0xf]
    %v1219 = vld [vmem:[%s1204 + $0x38] sm:$0xf]
    %v1220 = vld [vmem:[%s1204 + $0x3c] sm:$0xf]
    %s1221 = scalar_lea.vmem [#allocation7], 10
    %v1222 = vld [vmem:[%s1221] sm:$0x1]
    %v1224 = vlaneseq
    %v1225 = vshrl.u32 %v1224, 7
    %v1226 = vsub.s32 0, %v1225
    %v1227 = vrot.slane %v1222, %v1226
    %v1245 = vunpack.c.l.b16 %v1205
    %v1246 = vunpack.c.l.b16 %v1206
    %v1247 = vunpack.c.l.b16 %v1207
    %v1248 = vunpack.c.l.b16 %v1208
    %v1249 = vunpack.c.l.b16 %v1209
    %v1250 = vunpack.c.l.b16 %v1210
    %v1251 = vunpack.c.l.b16 %v1211
    %v1252 = vunpack.c.l.b16 %v1212
    %v1253 = vunpack.c.l.b16 %v1213
    %v1254 = vunpack.c.l.b16 %v1214
    %v1255 = vunpack.c.l.b16 %v1215
    %v1256 = vunpack.c.l.b16 %v1216
    %v1257 = vunpack.c.l.b16 %v1217
    %v1258 = vunpack.c.l.b16 %v1218
    %v1259 = vunpack.c.l.b16 %v1219
    %v1260 = vunpack.c.l.b16 %v1220
    %v1261 = vpack.c.b16 %v1246, %v1245
    %v1262 = vpack.c.b16 %v1248, %v1247
    %v1263 = vpack.c.b16 %v1250, %v1249
    %v1264 = vpack.c.b16 %v1252, %v1251
    %v1265 = vpack.c.b16 %v1254, %v1253
    %v1266 = vpack.c.b16 %v1256, %v1255
    %v1267 = vpack.c.b16 %v1258, %v1257
    %v1268 = vpack.c.b16 %v1260, %v1259
    %1277 = vmatprep.subr.bf16.mxu0 0
    %1278 = vmatpush1.bf16.msra.mxu0 %v1261
    %1279 = vmatprep.subr.bf16.mxu0 0
    %1280 = vmatpush1.bf16.msra.mxu0 %v1262
    %1281 = vmatprep.subr.bf16.mxu0 0
    %1282 = vmatpush1.bf16.msra.mxu0 %v1263
    %1283 = vmatprep.subr.bf16.mxu0 0
    %1284 = vmatpush1.bf16.msra.mxu0 %v1264
    %1285 = vmatprep.subr.bf16.mxu0 0
    %1286 = vmatpush1.bf16.msra.mxu0 %v1265
    %1287 = vmatprep.subr.bf16.mxu0 0
    %1288 = vmatpush1.bf16.msra.mxu0 %v1266
    %1289 = vmatprep.subr.bf16.mxu0 0
    %1290 = vmatpush1.bf16.msra.mxu0 %v1267
    %1291 = vmatprep.subr.bf16.mxu0 0
    %1292 = vmatpush1.bf16.msra.mxu0 %v1268
    %1293 = vmatprep.subr.bf16.mxu0 0
    %1294 = vmatpush1.bf16.msra.mxu0 0
    %1295 = vmatprep.subr.bf16.mxu0 0
    %1296 = vmatpush1.bf16.msra.mxu0 0
    %1297 = vmatprep.subr.bf16.mxu0 0
    %1298 = vmatpush1.bf16.msra.mxu0 0
    %1299 = vmatprep.subr.bf16.mxu0 0
    %1300 = vmatpush1.bf16.msra.mxu0 0
    %1301 = vmatprep.subr.bf16.mxu0 0
    %1302 = vmatpush1.bf16.msra.mxu0 0
    %1303 = vmatprep.subr.bf16.mxu0 0
    %1304 = vmatpush1.bf16.msra.mxu0 0
    %1305 = vmatprep.subr.bf16.mxu0 0
    %1306 = vmatpush1.bf16.msra.mxu0 0
    %1307 = vmatprep.subr.bf16.mxu0 0
    %1308 = vmatpush1.bf16.msra.mxu0 0
    %1309 = vmatprep.mubr.bf16.mxu0 0
    %1310 = vmatmul.mubr.bf16.gmra.mrb[0].mxu0 %v1203
    %v1311 = vpop.f32.mrb[0].mxu0
    %v1312 = vadd.f32 %v1227, %v1311
    %v1313 = vpop.f32.mrb[0].mxu0
    %v1314 = vpop.f32.mrb[0].mxu0
    %v1315 = vpop.f32.mrb[0].mxu0
    %1316 = vdwg.mxu0
    %v1317 = vmax.f32 %v1312, 0.0
    %v1318 = vpack.c.bf16 %v1317, %v1317
    %s1319 = scalar_lea.vmem [#allocation5], 704
    %v1320 = vld [vmem:[%s1319] sm:$0xf]
    %v1321 = vld [vmem:[%s1319 + $0x4] sm:$0xf]
    %v1322 = vld [vmem:[%s1319 + $0x8] sm:$0xf]
    %v1323 = vld [vmem:[%s1319 + $0xc] sm:$0xf]
    %v1324 = vld [vmem:[%s1319 + $0x10] sm:$0xf]
    %v1325 = vld [vmem:[%s1319 + $0x14] sm:$0xf]
    %v1326 = vld [vmem:[%s1319 + $0x18] sm:$0xf]
    %v1327 = vld [vmem:[%s1319 + $0x1c] sm:$0xf]
    %v1328 = vld [vmem:[%s1319 + $0x20] sm:$0xf]
    %v1329 = vld [vmem:[%s1319 + $0x24] sm:$0xf]
    %v1330 = vld [vmem:[%s1319 + $0x28] sm:$0xf]
    %v1331 = vld [vmem:[%s1319 + $0x2c] sm:$0xf]
    %v1332 = vld [vmem:[%s1319 + $0x30] sm:$0xf]
    %v1333 = vld [vmem:[%s1319 + $0x34] sm:$0xf]
    %v1334 = vld [vmem:[%s1319 + $0x38] sm:$0xf]
    %v1335 = vld [vmem:[%s1319 + $0x3c] sm:$0xf]
    %s1336 = scalar_lea.vmem [#allocation7], 11
    %v1337 = vld [vmem:[%s1336] sm:$0x1]
    %v1339 = vlaneseq
    %v1340 = vshrl.u32 %v1339, 7
    %v1341 = vsub.s32 0, %v1340
    %v1342 = vrot.slane %v1337, %v1341
    %v1360 = vunpack.c.l.b16 %v1320
    %v1361 = vunpack.c.l.b16 %v1321
    %v1362 = vunpack.c.l.b16 %v1322
    %v1363 = vunpack.c.l.b16 %v1323
    %v1364 = vunpack.c.l.b16 %v1324
    %v1365 = vunpack.c.l.b16 %v1325
    %v1366 = vunpack.c.l.b16 %v1326
    %v1367 = vunpack.c.l.b16 %v1327
    %v1368 = vunpack.c.l.b16 %v1328
    %v1369 = vunpack.c.l.b16 %v1329
    %v1370 = vunpack.c.l.b16 %v1330
    %v1371 = vunpack.c.l.b16 %v1331
    %v1372 = vunpack.c.l.b16 %v1332
    %v1373 = vunpack.c.l.b16 %v1333
    %v1374 = vunpack.c.l.b16 %v1334
    %v1375 = vunpack.c.l.b16 %v1335
    %v1376 = vpack.c.b16 %v1361, %v1360
    %v1377 = vpack.c.b16 %v1363, %v1362
    %v1378 = vpack.c.b16 %v1365, %v1364
    %v1379 = vpack.c.b16 %v1367, %v1366
    %v1380 = vpack.c.b16 %v1369, %v1368
    %v1381 = vpack.c.b16 %v1371, %v1370
    %v1382 = vpack.c.b16 %v1373, %v1372
    %v1383 = vpack.c.b16 %v1375, %v1374
    %1392 = vmatprep.subr.bf16.mxu0 0
    %1393 = vmatpush1.bf16.msra.mxu0 %v1376
    %1394 = vmatprep.subr.bf16.mxu0 0
    %1395 = vmatpush1.bf16.msra.mxu0 %v1377
    %1396 = vmatprep.subr.bf16.mxu0 0
    %1397 = vmatpush1.bf16.msra.mxu0 %v1378
    %1398 = vmatprep.subr.bf16.mxu0 0
    %1399 = vmatpush1.bf16.msra.mxu0 %v1379
    %1400 = vmatprep.subr.bf16.mxu0 0
    %1401 = vmatpush1.bf16.msra.mxu0 %v1380
    %1402 = vmatprep.subr.bf16.mxu0 0
    %1403 = vmatpush1.bf16.msra.mxu0 %v1381
    %1404 = vmatprep.subr.bf16.mxu0 0
    %1405 = vmatpush1.bf16.msra.mxu0 %v1382
    %1406 = vmatprep.subr.bf16.mxu0 0
    %1407 = vmatpush1.bf16.msra.mxu0 %v1383
    %1408 = vmatprep.subr.bf16.mxu0 0
    %1409 = vmatpush1.bf16.msra.mxu0 0
    %1410 = vmatprep.subr.bf16.mxu0 0
    %1411 = vmatpush1.bf16.msra.mxu0 0
    %1412 = vmatprep.subr.bf16.mxu0 0
    %1413 = vmatpush1.bf16.msra.mxu0 0
    %1414 = vmatprep.subr.bf16.mxu0 0
    %1415 = vmatpush1.bf16.msra.mxu0 0
    %1416 = vmatprep.subr.bf16.mxu0 0
    %1417 = vmatpush1.bf16.msra.mxu0 0
    %1418 = vmatprep.subr.bf16.mxu0 0
    %1419 = vmatpush1.bf16.msra.mxu0 0
    %1420 = vmatprep.subr.bf16.mxu0 0
    %1421 = vmatpush1.bf16.msra.mxu0 0
    %1422 = vmatprep.subr.bf16.mxu0 0
    %1423 = vmatpush1.bf16.msra.mxu0 0
    %1424 = vmatprep.mubr.bf16.mxu0 0
    %1425 = vmatmul.mubr.bf16.gmra.mrb[0].mxu0 %v1318
    %v1426 = vpop.f32.mrb[0].mxu0
    %v1427 = vadd.f32 %v1342, %v1426
    %v1428 = vpop.f32.mrb[0].mxu0
    %v1429 = vpop.f32.mrb[0].mxu0
    %v1430 = vpop.f32.mrb[0].mxu0
    %1431 = vdwg.mxu0
    %v1432 = vmax.f32 %v1427, 0.0
    %v1433 = vpack.c.bf16 %v1432, %v1432
    %s1434 = scalar_lea.vmem [#allocation5], 768
    %v1435 = vld [vmem:[%s1434] sm:$0xf]
    %v1436 = vld [vmem:[%s1434 + $0x4] sm:$0xf]
    %v1437 = vld [vmem:[%s1434 + $0x8] sm:$0xf]
    %v1438 = vld [vmem:[%s1434 + $0xc] sm:$0xf]
    %v1439 = vld [vmem:[%s1434 + $0x10] sm:$0xf]
    %v1440 = vld [vmem:[%s1434 + $0x14] sm:$0xf]
    %v1441 = vld [vmem:[%s1434 + $0x18] sm:$0xf]
    %v1442 = vld [vmem:[%s1434 + $0x1c] sm:$0xf]
    %v1443 = vld [vmem:[%s1434 + $0x20] sm:$0xf]
    %v1444 = vld [vmem:[%s1434 + $0x24] sm:$0xf]
    %v1445 = vld [vmem:[%s1434 + $0x28] sm:$0xf]
    %v1446 = vld [vmem:[%s1434 + $0x2c] sm:$0xf]
    %v1447 = vld [vmem:[%s1434 + $0x30] sm:$0xf]
    %v1448 = vld [vmem:[%s1434 + $0x34] sm:$0xf]
    %v1449 = vld [vmem:[%s1434 + $0x38] sm:$0xf]
    %v1450 = vld [vmem:[%s1434 + $0x3c] sm:$0xf]
    %s1451 = scalar_lea.vmem [#allocation7], 12
    %v1452 = vld [vmem:[%s1451] sm:$0x1]
    %v1454 = vlaneseq
    %v1455 = vshrl.u32 %v1454, 7
    %v1456 = vsub.s32 0, %v1455
    %v1457 = vrot.slane %v1452, %v1456
    %v1475 = vunpack.c.l.b16 %v1435
    %v1476 = vunpack.c.l.b16 %v1436
    %v1477 = vunpack.c.l.b16 %v1437
    %v1478 = vunpack.c.l.b16 %v1438
    %v1479 = vunpack.c.l.b16 %v1439
    %v1480 = vunpack.c.l.b16 %v1440
    %v1481 = vunpack.c.l.b16 %v1441
    %v1482 = vunpack.c.l.b16 %v1442
    %v1483 = vunpack.c.l.b16 %v1443
    %v1484 = vunpack.c.l.b16 %v1444
    %v1485 = vunpack.c.l.b16 %v1445
    %v1486 = vunpack.c.l.b16 %v1446
    %v1487 = vunpack.c.l.b16 %v1447
    %v1488 = vunpack.c.l.b16 %v1448
    %v1489 = vunpack.c.l.b16 %v1449
    %v1490 = vunpack.c.l.b16 %v1450
    %v1491 = vpack.c.b16 %v1476, %v1475
    %v1492 = vpack.c.b16 %v1478, %v1477
    %v1493 = vpack.c.b16 %v1480, %v1479
    %v1494 = vpack.c.b16 %v1482, %v1481
    %v1495 = vpack.c.b16 %v1484, %v1483
    %v1496 = vpack.c.b16 %v1486, %v1485
    %v1497 = vpack.c.b16 %v1488, %v1487
    %v1498 = vpack.c.b16 %v1490, %v1489
    %1507 = vmatprep.subr.bf16.mxu0 0
    %1508 = vmatpush1.bf16.msra.mxu0 %v1491
    %1509 = vmatprep.subr.bf16.mxu0 0
    %1510 = vmatpush1.bf16.msra.mxu0 %v1492
    %1511 = vmatprep.subr.bf16.mxu0 0
    %1512 = vmatpush1.bf16.msra.mxu0 %v1493
    %1513 = vmatprep.subr.bf16.mxu0 0
    %1514 = vmatpush1.bf16.msra.mxu0 %v1494
    %1515 = vmatprep.subr.bf16.mxu0 0
    %1516 = vmatpush1.bf16.msra.mxu0 %v1495
    %1517 = vmatprep.subr.bf16.mxu0 0
    %1518 = vmatpush1.bf16.msra.mxu0 %v1496
    %1519 = vmatprep.subr.bf16.mxu0 0
    %1520 = vmatpush1.bf16.msra.mxu0 %v1497
    %1521 = vmatprep.subr.bf16.mxu0 0
    %1522 = vmatpush1.bf16.msra.mxu0 %v1498
    %1523 = vmatprep.subr.bf16.mxu0 0
    %1524 = vmatpush1.bf16.msra.mxu0 0
    %1525 = vmatprep.subr.bf16.mxu0 0
    %1526 = vmatpush1.bf16.msra.mxu0 0
    %1527 = vmatprep.subr.bf16.mxu0 0
    %1528 = vmatpush1.bf16.msra.mxu0 0
    %1529 = vmatprep.subr.bf16.mxu0 0
    %1530 = vmatpush1.bf16.msra.mxu0 0
    %1531 = vmatprep.subr.bf16.mxu0 0
    %1532 = vmatpush1.bf16.msra.mxu0 0
    %1533 = vmatprep.subr.bf16.mxu0 0
    %1534 = vmatpush1.bf16.msra.mxu0 0
    %1535 = vmatprep.subr.bf16.mxu0 0
    %1536 = vmatpush1.bf16.msra.mxu0 0
    %1537 = vmatprep.subr.bf16.mxu0 0
    %1538 = vmatpush1.bf16.msra.mxu0 0
    %1539 = vmatprep.mubr.bf16.mxu0 0
    %1540 = vmatmul.mubr.bf16.gmra.mrb[0].mxu0 %v1433
    %v1541 = vpop.f32.mrb[0].mxu0
    %v1542 = vadd.f32 %v1457, %v1541
    %v1543 = vpop.f32.mrb[0].mxu0
    %v1544 = vpop.f32.mrb[0].mxu0
    %v1545 = vpop.f32.mrb[0].mxu0
    %1546 = vdwg.mxu0
    %v1547 = vmax.f32 %v1542, 0.0
    %v1548 = vpack.c.bf16 %v1547, %v1547
    %s1549 = scalar_lea.vmem [#allocation5], 832
    %v1550 = vld [vmem:[%s1549] sm:$0xf]
    %v1551 = vld [vmem:[%s1549 + $0x4] sm:$0xf]
    %v1552 = vld [vmem:[%s1549 + $0x8] sm:$0xf]
    %v1553 = vld [vmem:[%s1549 + $0xc] sm:$0xf]
    %v1554 = vld [vmem:[%s1549 + $0x10] sm:$0xf]
    %v1555 = vld [vmem:[%s1549 + $0x14] sm:$0xf]
    %v1556 = vld [vmem:[%s1549 + $0x18] sm:$0xf]
    %v1557 = vld [vmem:[%s1549 + $0x1c] sm:$0xf]
    %v1558 = vld [vmem:[%s1549 + $0x20] sm:$0xf]
    %v1559 = vld [vmem:[%s1549 + $0x24] sm:$0xf]
    %v1560 = vld [vmem:[%s1549 + $0x28] sm:$0xf]
    %v1561 = vld [vmem:[%s1549 + $0x2c] sm:$0xf]
    %v1562 = vld [vmem:[%s1549 + $0x30] sm:$0xf]
    %v1563 = vld [vmem:[%s1549 + $0x34] sm:$0xf]
    %v1564 = vld [vmem:[%s1549 + $0x38] sm:$0xf]
    %v1565 = vld [vmem:[%s1549 + $0x3c] sm:$0xf]
    %s1566 = scalar_lea.vmem [#allocation7], 13
    %v1567 = vld [vmem:[%s1566] sm:$0x1]
    %v1569 = vlaneseq
    %v1570 = vshrl.u32 %v1569, 7
    %v1571 = vsub.s32 0, %v1570
    %v1572 = vrot.slane %v1567, %v1571
    %v1590 = vunpack.c.l.b16 %v1550
    %v1591 = vunpack.c.l.b16 %v1551
    %v1592 = vunpack.c.l.b16 %v1552
    %v1593 = vunpack.c.l.b16 %v1553
    %v1594 = vunpack.c.l.b16 %v1554
    %v1595 = vunpack.c.l.b16 %v1555
    %v1596 = vunpack.c.l.b16 %v1556
    %v1597 = vunpack.c.l.b16 %v1557
    %v1598 = vunpack.c.l.b16 %v1558
    %v1599 = vunpack.c.l.b16 %v1559
    %v1600 = vunpack.c.l.b16 %v1560
    %v1601 = vunpack.c.l.b16 %v1561
    %v1602 = vunpack.c.l.b16 %v1562
    %v1603 = vunpack.c.l.b16 %v1563
    %v1604 = vunpack.c.l.b16 %v1564
    %v1605 = vunpack.c.l.b16 %v1565
    %v1606 = vpack.c.b16 %v1591, %v1590
    %v1607 = vpack.c.b16 %v1593, %v1592
    %v1608 = vpack.c.b16 %v1595, %v1594
    %v1609 = vpack.c.b16 %v1597, %v1596
    %v1610 = vpack.c.b16 %v1599, %v1598
    %v1611 = vpack.c.b16 %v1601, %v1600
    %v1612 = vpack.c.b16 %v1603, %v1602
    %v1613 = vpack.c.b16 %v1605, %v1604
    %1622 = vmatprep.subr.bf16.mxu0 0
    %1623 = vmatpush1.bf16.msra.mxu0 %v1606
    %1624 = vmatprep.subr.bf16.mxu0 0
    %1625 = vmatpush1.bf16.msra.mxu0 %v1607
    %1626 = vmatprep.subr.bf16.mxu0 0
    %1627 = vmatpush1.bf16.msra.mxu0 %v1608
    %1628 = vmatprep.subr.bf16.mxu0 0
    %1629 = vmatpush1.bf16.msra.mxu0 %v1609
    %1630 = vmatprep.subr.bf16.mxu0 0
    %1631 = vmatpush1.bf16.msra.mxu0 %v1610
    %1632 = vmatprep.subr.bf16.mxu0 0
    %1633 = vmatpush1.bf16.msra.mxu0 %v1611
    %1634 = vmatprep.subr.bf16.mxu0 0
    %1635 = vmatpush1.bf16.msra.mxu0 %v1612
    %1636 = vmatprep.subr.bf16.mxu0 0
    %1637 = vmatpush1.bf16.msra.mxu0 %v1613
    %1638 = vmatprep.subr.bf16.mxu0 0
    %1639 = vmatpush1.bf16.msra.mxu0 0
    %1640 = vmatprep.subr.bf16.mxu0 0
    %1641 = vmatpush1.bf16.msra.mxu0 0
    %1642 = vmatprep.subr.bf16.mxu0 0
    %1643 = vmatpush1.bf16.msra.mxu0 0
    %1644 = vmatprep.subr.bf16.mxu0 0
    %1645 = vmatpush1.bf16.msra.mxu0 0
    %1646 = vmatprep.subr.bf16.mxu0 0
    %1647 = vmatpush1.bf16.msra.mxu0 0
    %1648 = vmatprep.subr.bf16.mxu0 0
    %1649 = vmatpush1.bf16.msra.mxu0 0
    %1650 = vmatprep.subr.bf16.mxu0 0
    %1651 = vmatpush1.bf16.msra.mxu0 0
    %1652 = vmatprep.subr.bf16.mxu0 0
    %1653 = vmatpush1.bf16.msra.mxu0 0
    %1654 = vmatprep.mubr.bf16.mxu0 0
    %1655 = vmatmul.mubr.bf16.gmra.mrb[0].mxu0 %v1548
    %v1656 = vpop.f32.mrb[0].mxu0
    %v1657 = vadd.f32 %v1572, %v1656
    %v1658 = vpop.f32.mrb[0].mxu0
    %v1659 = vpop.f32.mrb[0].mxu0
    %v1660 = vpop.f32.mrb[0].mxu0
    %1661 = vdwg.mxu0
    %v1662 = vmax.f32 %v1657, 0.0
    %v1663 = vpack.c.bf16 %v1662, %v1662
    %s1664 = scalar_lea.vmem [#allocation5], 896
    %v1665 = vld [vmem:[%s1664] sm:$0xf]
    %v1666 = vld [vmem:[%s1664 + $0x4] sm:$0xf]
    %v1667 = vld [vmem:[%s1664 + $0x8] sm:$0xf]
    %v1668 = vld [vmem:[%s1664 + $0xc] sm:$0xf]
    %v1669 = vld [vmem:[%s1664 + $0x10] sm:$0xf]
    %v1670 = vld [vmem:[%s1664 + $0x14] sm:$0xf]
    %v1671 = vld [vmem:[%s1664 + $0x18] sm:$0xf]
    %v1672 = vld [vmem:[%s1664 + $0x1c] sm:$0xf]
    %v1673 = vld [vmem:[%s1664 + $0x20] sm:$0xf]
    %v1674 = vld [vmem:[%s1664 + $0x24] sm:$0xf]
    %v1675 = vld [vmem:[%s1664 + $0x28] sm:$0xf]
    %v1676 = vld [vmem:[%s1664 + $0x2c] sm:$0xf]
    %v1677 = vld [vmem:[%s1664 + $0x30] sm:$0xf]
    %v1678 = vld [vmem:[%s1664 + $0x34] sm:$0xf]
    %v1679 = vld [vmem:[%s1664 + $0x38] sm:$0xf]
    %v1680 = vld [vmem:[%s1664 + $0x3c] sm:$0xf]
    %s1681 = scalar_lea.vmem [#allocation7], 14
    %v1682 = vld [vmem:[%s1681] sm:$0x1]
    %v1684 = vlaneseq
    %v1685 = vshrl.u32 %v1684, 7
    %v1686 = vsub.s32 0, %v1685
    %v1687 = vrot.slane %v1682, %v1686
    %v1705 = vunpack.c.l.b16 %v1665
    %v1706 = vunpack.c.l.b16 %v1666
    %v1707 = vunpack.c.l.b16 %v1667
    %v1708 = vunpack.c.l.b16 %v1668
    %v1709 = vunpack.c.l.b16 %v1669
    %v1710 = vunpack.c.l.b16 %v1670
    %v1711 = vunpack.c.l.b16 %v1671
    %v1712 = vunpack.c.l.b16 %v1672
    %v1713 = vunpack.c.l.b16 %v1673
    %v1714 = vunpack.c.l.b16 %v1674
    %v1715 = vunpack.c.l.b16 %v1675
    %v1716 = vunpack.c.l.b16 %v1676
    %v1717 = vunpack.c.l.b16 %v1677
    %v1718 = vunpack.c.l.b16 %v1678
    %v1719 = vunpack.c.l.b16 %v1679
    %v1720 = vunpack.c.l.b16 %v1680
    %v1721 = vpack.c.b16 %v1706, %v1705
    %v1722 = vpack.c.b16 %v1708, %v1707
    %v1723 = vpack.c.b16 %v1710, %v1709
    %v1724 = vpack.c.b16 %v1712, %v1711
    %v1725 = vpack.c.b16 %v1714, %v1713
    %v1726 = vpack.c.b16 %v1716, %v1715
    %v1727 = vpack.c.b16 %v1718, %v1717
    %v1728 = vpack.c.b16 %v1720, %v1719
    %1737 = vmatprep.subr.bf16.mxu0 0
    %1738 = vmatpush1.bf16.msra.mxu0 %v1721
    %1739 = vmatprep.subr.bf16.mxu0 0
    %1740 = vmatpush1.bf16.msra.mxu0 %v1722
    %1741 = vmatprep.subr.bf16.mxu0 0
    %1742 = vmatpush1.bf16.msra.mxu0 %v1723
    %1743 = vmatprep.subr.bf16.mxu0 0
    %1744 = vmatpush1.bf16.msra.mxu0 %v1724
    %1745 = vmatprep.subr.bf16.mxu0 0
    %1746 = vmatpush1.bf16.msra.mxu0 %v1725
    %1747 = vmatprep.subr.bf16.mxu0 0
    %1748 = vmatpush1.bf16.msra.mxu0 %v1726
    %1749 = vmatprep.subr.bf16.mxu0 0
    %1750 = vmatpush1.bf16.msra.mxu0 %v1727
    %1751 = vmatprep.subr.bf16.mxu0 0
    %1752 = vmatpush1.bf16.msra.mxu0 %v1728
    %1753 = vmatprep.subr.bf16.mxu0 0
    %1754 = vmatpush1.bf16.msra.mxu0 0
    %1755 = vmatprep.subr.bf16.mxu0 0
    %1756 = vmatpush1.bf16.msra.mxu0 0
    %1757 = vmatprep.subr.bf16.mxu0 0
    %1758 = vmatpush1.bf16.msra.mxu0 0
    %1759 = vmatprep.subr.bf16.mxu0 0
    %1760 = vmatpush1.bf16.msra.mxu0 0
    %1761 = vmatprep.subr.bf16.mxu0 0
    %1762 = vmatpush1.bf16.msra.mxu0 0
    %1763 = vmatprep.subr.bf16.mxu0 0
    %1764 = vmatpush1.bf16.msra.mxu0 0
    %1765 = vmatprep.subr.bf16.mxu0 0
    %1766 = vmatpush1.bf16.msra.mxu0 0
    %1767 = vmatprep.subr.bf16.mxu0 0
    %1768 = vmatpush1.bf16.msra.mxu0 0
    %1769 = vmatprep.mubr.bf16.mxu0 0
    %1770 = vmatmul.mubr.bf16.gmra.mrb[0].mxu0 %v1663
    %v1771 = vpop.f32.mrb[0].mxu0
    %v1772 = vadd.f32 %v1687, %v1771
    %v1773 = vpop.f32.mrb[0].mxu0
    %v1774 = vpop.f32.mrb[0].mxu0
    %v1775 = vpop.f32.mrb[0].mxu0
    %1776 = vdwg.mxu0
    %v1777 = vmax.f32 %v1772, 0.0
    %v1778 = vpack.c.bf16 %v1777, %v1777
    %s1779 = scalar_lea.vmem [#allocation5], 960
    %v1780 = vld [vmem:[%s1779] sm:$0xf]
    %v1781 = vld [vmem:[%s1779 + $0x4] sm:$0xf]
    %v1782 = vld [vmem:[%s1779 + $0x8] sm:$0xf]
    %v1783 = vld [vmem:[%s1779 + $0xc] sm:$0xf]
    %v1784 = vld [vmem:[%s1779 + $0x10] sm:$0xf]
    %v1785 = vld [vmem:[%s1779 + $0x14] sm:$0xf]
    %v1786 = vld [vmem:[%s1779 + $0x18] sm:$0xf]
    %v1787 = vld [vmem:[%s1779 + $0x1c] sm:$0xf]
    %v1788 = vld [vmem:[%s1779 + $0x20] sm:$0xf]
    %v1789 = vld [vmem:[%s1779 + $0x24] sm:$0xf]
    %v1790 = vld [vmem:[%s1779 + $0x28] sm:$0xf]
    %v1791 = vld [vmem:[%s1779 + $0x2c] sm:$0xf]
    %v1792 = vld [vmem:[%s1779 + $0x30] sm:$0xf]
    %v1793 = vld [vmem:[%s1779 + $0x34] sm:$0xf]
    %v1794 = vld [vmem:[%s1779 + $0x38] sm:$0xf]
    %v1795 = vld [vmem:[%s1779 + $0x3c] sm:$0xf]
    %s1796 = scalar_lea.vmem [#allocation7], 15
    %v1797 = vld [vmem:[%s1796] sm:$0x1]
    %v1799 = vlaneseq
    %v1800 = vshrl.u32 %v1799, 7
    %v1801 = vsub.s32 0, %v1800
    %v1802 = vrot.slane %v1797, %v1801
    %v1820 = vunpack.c.l.b16 %v1780
    %v1821 = vunpack.c.l.b16 %v1781
    %v1822 = vunpack.c.l.b16 %v1782
    %v1823 = vunpack.c.l.b16 %v1783
    %v1824 = vunpack.c.l.b16 %v1784
    %v1825 = vunpack.c.l.b16 %v1785
    %v1826 = vunpack.c.l.b16 %v1786
    %v1827 = vunpack.c.l.b16 %v1787
    %v1828 = vunpack.c.l.b16 %v1788
    %v1829 = vunpack.c.l.b16 %v1789
    %v1830 = vunpack.c.l.b16 %v1790
    %v1831 = vunpack.c.l.b16 %v1791
    %v1832 = vunpack.c.l.b16 %v1792
    %v1833 = vunpack.c.l.b16 %v1793
    %v1834 = vunpack.c.l.b16 %v1794
    %v1835 = vunpack.c.l.b16 %v1795
    %v1836 = vpack.c.b16 %v1821, %v1820
    %v1837 = vpack.c.b16 %v1823, %v1822
    %v1838 = vpack.c.b16 %v1825, %v1824
    %v1839 = vpack.c.b16 %v1827, %v1826
    %v1840 = vpack.c.b16 %v1829, %v1828
    %v1841 = vpack.c.b16 %v1831, %v1830
    %v1842 = vpack.c.b16 %v1833, %v1832
    %v1843 = vpack.c.b16 %v1835, %v1834
    %1852 = vmatprep.subr.bf16.mxu0 0
    %1853 = vmatpush1.bf16.msra.mxu0 %v1836
    %1854 = vmatprep.subr.bf16.mxu0 0
    %1855 = vmatpush1.bf16.msra.mxu0 %v1837
    %1856 = vmatprep.subr.bf16.mxu0 0
    %1857 = vmatpush1.bf16.msra.mxu0 %v1838
    %1858 = vmatprep.subr.bf16.mxu0 0
    %1859 = vmatpush1.bf16.msra.mxu0 %v1839
    %1860 = vmatprep.subr.bf16.mxu0 0
    %1861 = vmatpush1.bf16.msra.mxu0 %v1840
    %1862 = vmatprep.subr.bf16.mxu0 0
    %1863 = vmatpush1.bf16.msra.mxu0 %v1841
    %1864 = vmatprep.subr.bf16.mxu0 0
    %1865 = vmatpush1.bf16.msra.mxu0 %v1842
    %1866 = vmatprep.subr.bf16.mxu0 0
    %1867 = vmatpush1.bf16.msra.mxu0 %v1843
    %1868 = vmatprep.subr.bf16.mxu0 0
    %1869 = vmatpush1.bf16.msra.mxu0 0
    %1870 = vmatprep.subr.bf16.mxu0 0
    %1871 = vmatpush1.bf16.msra.mxu0 0
    %1872 = vmatprep.subr.bf16.mxu0 0
    %1873 = vmatpush1.bf16.msra.mxu0 0
    %1874 = vmatprep.subr.bf16.mxu0 0
    %1875 = vmatpush1.bf16.msra.mxu0 0
    %1876 = vmatprep.subr.bf16.mxu0 0
    %1877 = vmatpush1.bf16.msra.mxu0 0
    %1878 = vmatprep.subr.bf16.mxu0 0
    %1879 = vmatpush1.bf16.msra.mxu0 0
    %1880 = vmatprep.subr.bf16.mxu0 0
    %1881 = vmatpush1.bf16.msra.mxu0 0
    %1882 = vmatprep.subr.bf16.mxu0 0
    %1883 = vmatpush1.bf16.msra.mxu0 0
    %1884 = vmatprep.mubr.bf16.mxu0 0
    %1885 = vmatmul.mubr.bf16.gmra.mrb[0].mxu0 %v1778
    %v1886 = vpop.f32.mrb[0].mxu0
    %v1887 = vadd.f32 %v1802, %v1886
    %v1888 = vpop.f32.mrb[0].mxu0
    %v1889 = vpop.f32.mrb[0].mxu0
    %v1890 = vpop.f32.mrb[0].mxu0
    %1891 = vdwg.mxu0
    %v1892 = vmax.f32 %v1887, 0.0
    %v1893 = vpack.c.bf16 %v1892, %v1892
    %s1894 = scalar_lea.vmem [#allocation5], 1024
    %v1895 = vld [vmem:[%s1894] sm:$0xf]
    %v1896 = vld [vmem:[%s1894 + $0x4] sm:$0xf]
    %v1897 = vld [vmem:[%s1894 + $0x8] sm:$0xf]
    %v1898 = vld [vmem:[%s1894 + $0xc] sm:$0xf]
    %v1899 = vld [vmem:[%s1894 + $0x10] sm:$0xf]
    %v1900 = vld [vmem:[%s1894 + $0x14] sm:$0xf]
    %v1901 = vld [vmem:[%s1894 + $0x18] sm:$0xf]
    %v1902 = vld [vmem:[%s1894 + $0x1c] sm:$0xf]
    %v1903 = vld [vmem:[%s1894 + $0x20] sm:$0xf]
    %v1904 = vld [vmem:[%s1894 + $0x24] sm:$0xf]
    %v1905 = vld [vmem:[%s1894 + $0x28] sm:$0xf]
    %v1906 = vld [vmem:[%s1894 + $0x2c] sm:$0xf]
    %v1907 = vld [vmem:[%s1894 + $0x30] sm:$0xf]
    %v1908 = vld [vmem:[%s1894 + $0x34] sm:$0xf]
    %v1909 = vld [vmem:[%s1894 + $0x38] sm:$0xf]
    %v1910 = vld [vmem:[%s1894 + $0x3c] sm:$0xf]
    %s1911 = scalar_lea.vmem [#allocation7], 16
    %v1912 = vld [vmem:[%s1911] sm:$0x1]
    %v1914 = vlaneseq
    %v1915 = vshrl.u32 %v1914, 7
    %v1916 = vsub.s32 0, %v1915
    %v1917 = vrot.slane %v1912, %v1916
    %v1935 = vunpack.c.l.b16 %v1895
    %v1936 = vunpack.c.l.b16 %v1896
    %v1937 = vunpack.c.l.b16 %v1897
    %v1938 = vunpack.c.l.b16 %v1898
    %v1939 = vunpack.c.l.b16 %v1899
    %v1940 = vunpack.c.l.b16 %v1900
    %v1941 = vunpack.c.l.b16 %v1901
    %v1942 = vunpack.c.l.b16 %v1902
    %v1943 = vunpack.c.l.b16 %v1903
    %v1944 = vunpack.c.l.b16 %v1904
    %v1945 = vunpack.c.l.b16 %v1905
    %v1946 = vunpack.c.l.b16 %v1906
    %v1947 = vunpack.c.l.b16 %v1907
    %v1948 = vunpack.c.l.b16 %v1908
    %v1949 = vunpack.c.l.b16 %v1909
    %v1950 = vunpack.c.l.b16 %v1910
    %v1951 = vpack.c.b16 %v1936, %v1935
    %v1952 = vpack.c.b16 %v1938, %v1937
    %v1953 = vpack.c.b16 %v1940, %v1939
    %v1954 = vpack.c.b16 %v1942, %v1941
    %v1955 = vpack.c.b16 %v1944, %v1943
    %v1956 = vpack.c.b16 %v1946, %v1945
    %v1957 = vpack.c.b16 %v1948, %v1947
    %v1958 = vpack.c.b16 %v1950, %v1949
    %1967 = vmatprep.subr.bf16.mxu0 0
    %1968 = vmatpush1.bf16.msra.mxu0 %v1951
    %1969 = vmatprep.subr.bf16.mxu0 0
    %1970 = vmatpush1.bf16.msra.mxu0 %v1952
    %1971 = vmatprep.subr.bf16.mxu0 0
    %1972 = vmatpush1.bf16.msra.mxu0 %v1953
    %1973 = vmatprep.subr.bf16.mxu0 0
    %1974 = vmatpush1.bf16.msra.mxu0 %v1954
    %1975 = vmatprep.subr.bf16.mxu0 0
    %1976 = vmatpush1.bf16.msra.mxu0 %v1955
    %1977 = vmatprep.subr.bf16.mxu0 0
    %1978 = vmatpush1.bf16.msra.mxu0 %v1956
    %1979 = vmatprep.subr.bf16.mxu0 0
    %1980 = vmatpush1.bf16.msra.mxu0 %v1957
    %1981 = vmatprep.subr.bf16.mxu0 0
    %1982 = vmatpush1.bf16.msra.mxu0 %v1958
    %1983 = vmatprep.subr.bf16.mxu0 0
    %1984 = vmatpush1.bf16.msra.mxu0 0
    %1985 = vmatprep.subr.bf16.mxu0 0
    %1986 = vmatpush1.bf16.msra.mxu0 0
    %1987 = vmatprep.subr.bf16.mxu0 0
    %1988 = vmatpush1.bf16.msra.mxu0 0
    %1989 = vmatprep.subr.bf16.mxu0 0
    %1990 = vmatpush1.bf16.msra.mxu0 0
    %1991 = vmatprep.subr.bf16.mxu0 0
    %1992 = vmatpush1.bf16.msra.mxu0 0
    %1993 = vmatprep.subr.bf16.mxu0 0
    %1994 = vmatpush1.bf16.msra.mxu0 0
    %1995 = vmatprep.subr.bf16.mxu0 0
    %1996 = vmatpush1.bf16.msra.mxu0 0
    %1997 = vmatprep.subr.bf16.mxu0 0
    %1998 = vmatpush1.bf16.msra.mxu0 0
    %1999 = vmatprep.mubr.bf16.mxu0 0
    %2000 = vmatmul.mubr.bf16.gmra.mrb[0].mxu0 %v1893
    %v2001 = vpop.f32.mrb[0].mxu0
    %v2002 = vadd.f32 %v1917, %v2001
    %v2003 = vpop.f32.mrb[0].mxu0
    %v2004 = vpop.f32.mrb[0].mxu0
    %v2005 = vpop.f32.mrb[0].mxu0
    %2006 = vdwg.mxu0
    %2007 = vst [vmem:[#allocation8] sm:$0xff] %v2002
    // Predicated region
    $region26: #{tpu_custom_call.1} parent=1 // pred_check
      _
    $region27: #{tpu_custom_call.1} parent=1 // pred_check_branch
      %2009 = sbr.rel (0) target = $region29
    $region28: #{tpu_custom_call.1} parent=1 // pred_region
      %s2011 = ssub.s32 128, 128
      %2012 = vsyncadd [#allocation4], %s2011
      %s2014 = sshll.u32 [#allocation8], 4
      %s2015 = int_to_ptr.vmem [resolvable:$true] %s2014
      %2017 = dma.vmem_to_hbm [thread:$0]  %s2015, 128, %s3, [#allocation4]
    $region29: #{tpu_custom_call.1} parent=1 // pred_fallthru
      _
    // Predicated region
    $region30: #{tpu_custom_call.1} parent=1 // pred_check
      _
    $region31: #{tpu_custom_call.1} parent=1 // pred_check_branch
      %2019 = sbr.rel (0) target = $region33
    $region32: #{tpu_custom_call.1} parent=1 // pred_region
      %2020 = dma.done [#allocation4], 128
    $region33: #{tpu_custom_call.1} parent=1 // pred_fallthru
      _
    %2021 = vsyncpa [#allocation3], 1
    %2022 = vsyncpa [#allocation6], 1
    %2023 = vsyncpa [#allocation4], 1

</llo_original>
